<compile_context>
chip_gen: v7x
topology: tpu7x:2x2x1
jax: 0.10.0
libtpu: 0.0.40
codegen_flags: <defaults>
</compile_context>

<pallas_src>
import jax
import jax.numpy as jnp
from jax.experimental import pallas as pl
from jax.experimental.pallas import tpu as pltpu

B, C_IN, C_OUT, H, W = 2, 4, 8, 16, 16
T_CH = 16
GROUPS = 4         # must divide C_OUT (PyTorch default is 8; 4 chosen so Cg > 1)
EPS = 1e-5         # nn.GroupNorm default eps


# ------------------------------ kernel factory --------------------------------

def make_resblock_kernel(height, width, c_out, bsz, eps=EPS):
    hw = height * width
    bhw = bsz * hw
    nb = bsz

    def silu(v):
        return v * jax.nn.sigmoid(v)

    def stack_taps(inp, masks):
        # inp: [C, B*HW] -> [9*C, B*HW], tap k = (dy+1)*3 + (dx+1).
        # roll across the folded lane axis; the boundary mask zeroes every lane
        # whose tap falls outside the image (including batch-seam leakage).
        parts = []
        k = 0
        for dy in (-1, 0, 1):
            for dx in (-1, 0, 1):
                off = dy * width + dx
                if off == 0:
                    shifted = inp                      # center tap: mask all-ones
                else:
                    shifted = pltpu.roll(inp, shift=(-off) % bhw, axis=1)
                    shifted = shifted * masks[k:k + 1]
                parts.append(shifted)
                k += 1
        return jnp.concatenate(parts, axis=0)

    def gn_affine(h, gavg, seg_sum, seg_bc, gamma, beta, scale=None, shift=None):
        # GroupNorm over per-batch lane segments, with the affine (and optional
        # fused time scale/shift) applied via one broadcast-back matmul.
        s = jnp.dot(h, seg_sum, preferred_element_type=jnp.float32)        # [C, B]
        ss = jnp.dot(h * h, seg_sum, preferred_element_type=jnp.float32)   # [C, B]
        mom = jnp.dot(gavg, jnp.concatenate([s, ss], axis=1),
                      preferred_element_type=jnp.float32)                  # [C, 2B]
        mean = mom[:, :nb]
        var = jnp.maximum(mom[:, nb:] - mean * mean, 0.0)                  # clamp
        inv = jax.lax.rsqrt(var + eps)
        a = inv * gamma                                                    # [C, B]
        b = jnp.broadcast_to(beta, a.shape)
        if scale is not None:                       # y = gn(h)*scale + shift
            a = a * scale
            b = beta * scale + shift
        b = b - mean * a
        bc = jnp.dot(jnp.concatenate([a, b], axis=0), seg_bc,
                     preferred_element_type=jnp.float32)                   # [2C, BHW]
        return h * bc[:c_out] + bc[c_out:]

    def kernel(x_ref, w1sc_ref, w2_ref, cvec_ref, tvec_ref, masks_ref,
               gavg_ref, seg_sum_ref, seg_bc_ref, o_ref):
        x = x_ref[...]                               # [Cin_p, B*HW]
        masks = masks_ref[...]                       # [9, B*HW]
        gavg = gavg_ref[...]
        seg_sum = seg_sum_ref[...]
        seg_bc = seg_bc_ref[...]
        cvec = cvec_ref[...]                         # [C_out, 7]
        tvec = tvec_ref[...]                         # [C_out, 2B]

        b1, g1, be1 = cvec[:, 0:1], cvec[:, 1:2], cvec[:, 2:3]
        b2, g2, be2 = cvec[:, 3:4], cvec[:, 4:5], cvec[:, 5:6]
        bs = cvec[:, 6:7]
        scale, shift = tvec[:, :nb], tvec[:, nb:]

        # conv1 (3x3, pad=1) and 1x1 shortcut fused into ONE MXU matmul
        s1 = stack_taps(x, masks)                                    # [9*Cin_p, BHW]
        h1sc = jnp.dot(w1sc_ref[...], s1, preferred_element_type=jnp.float32)
        h1 = h1sc[:c_out] + b1
        sc = h1sc[c_out:] + bs

        # GroupNorm1 + time scale/shift (fused) + SiLU
        y = silu(gn_affine(h1, gavg, seg_sum, seg_bc, g1, be1, scale, shift))

        # conv2 (3x3, pad=1): one matmul on the resident VMEM tile
        s2 = stack_taps(y, masks)                                    # [9*C_out, BHW]
        h2 = jnp.dot(w2_ref[...], s2, preferred_element_type=jnp.float32) + b2

        # GroupNorm2 + SiLU, residual add
        y2 = silu(gn_affine(h2, gavg, seg_sum, seg_bc, g2, be2))
        o_ref[...] = y2 + sc

    return kernel


# ------------------------------ JAX wrapper ------------------------------------

def resblock_forward(x_nchw, params, time_emb):
    bsz, cin, hh, ww = x_nchw.shape
    cout = params["w1"].shape[0]
    hw = hh * ww
    bhw = bsz * hw
    cin_p = max(8, ((cin + 7) // 8) * 8)       # pad input channels to a sublane tile

    # Fold batch onto the lane axis: [B,C,H,W] -> [Cin_p, B*HW] (tiny XLA transpose).
    x_flat = jnp.transpose(x_nchw.reshape(bsz, cin, hw), (1, 0, 2)).reshape(cin, bhw)
    x_flat = jnp.pad(x_flat, ((0, cin_p - cin), (0, 0)))

    # conv1 taps + 1x1 shortcut folded into one [2*C_out, 9*Cin_p] weight.
    w1p = jnp.pad(params["w1"], ((0, 0), (0, cin_p - cin), (0, 0), (0, 0)))
    w1_flat = jnp.transpose(w1p, (0, 2, 3, 1)).reshape(cout, 9 * cin_p)
    ws = jnp.pad(params["ws"].reshape(cout, cin), ((0, 0), (0, cin_p - cin)))
    ws_rows = jnp.zeros((cout, 9 * cin_p), jnp.float32)
    ws_rows = ws_rows.at[:, 4 * cin_p:5 * cin_p].set(ws)        # center tap only
    w1sc = jnp.concatenate([w1_flat, ws_rows], axis=0)

    w2_flat = jnp.transpose(params["w2"], (0, 2, 3, 1)).reshape(cout, 9 * cout)

    # Per-channel constants consolidated into one block.
    cvec = jnp.stack([params["b1"], params["g1"], params["be1"],
                      params["b2"], params["g2"], params["be2"],
                      params["bs"]], axis=1)                     # [C_out, 7]

    # Time-embedding path hoisted (SiLU + Linear); +1 folded into scale.
    t = time_emb * jax.nn.sigmoid(time_emb)
    tproj = t @ params["wt"].T + params["bt"]                    # [B, 2*C_out]
    tvec = jnp.concatenate([tproj[:, :cout].T + 1.0, tproj[:, cout:].T],
                           axis=1)                               # [C_out, 2B]

    # Boundary-validity masks per 3x3 tap, tiled over batch: [9, B*HW].
    col = jnp.arange(hw)
    yy, xx = col // ww, col % ww
    mlist = [((yy + dy >= 0) & (yy + dy < hh) & (xx + dx >= 0) & (xx + dx < ww))
             for dy in (-1, 0, 1) for dx in (-1, 0, 1)]
    masks = jnp.tile(jnp.stack(mlist).astype(jnp.float32), (1, bsz))

    # GroupNorm helpers: group-averaging matrix and batch-segment sum/broadcast.
    cg = cout // GROUPS
    ch = jnp.arange(cout)
    gavg = ((ch[:, None] // cg) == (ch[None, :] // cg)).astype(jnp.float32) / (cg * hw)
    bidx = jnp.arange(bhw) // hw
    seg_bc = (bidx[None, :] == jnp.arange(bsz)[:, None]).astype(jnp.float32)  # [B, BHW]
    seg_sum = seg_bc.T                                                        # [BHW, B]

    kernel = make_resblock_kernel(hh, ww, cout, bsz)
    full = lambda shape: pl.BlockSpec(shape, lambda i: (0,) * len(shape))

    out_flat = pl.pallas_call(
        kernel,
        out_shape=jax.ShapeDtypeStruct((cout, bhw), jnp.float32),
        grid=(1,),
        in_specs=[full(x_flat.shape), full(w1sc.shape), full(w2_flat.shape),
                  full(cvec.shape), full(tvec.shape), full(masks.shape),
                  full(gavg.shape), full(seg_sum.shape), full(seg_bc.shape)],
        out_specs=full((cout, bhw)),
        compiler_params=pltpu.CompilerParams(
            dimension_semantics=("arbitrary",)),
    )(x_flat, w1sc, w2_flat, cvec, tvec, masks, gavg, seg_sum, seg_bc)

    # [C_out, B*HW] -> NCHW.
    return out_flat.reshape(cout, bsz, hw).transpose(1, 0, 2).reshape(bsz, cout, hh, ww)
    # TODO(synk): identity shortcut (in_channels == out_channels) and
    # time_emb=None paths of the module are not exercised at these shapes.


# ---------------------------- params & reference -------------------------------

def init_params(key):
    ks = jax.random.split(key, 12)
    p = {}
    p["w1"] = 0.1 * jax.random.normal(ks[0], (C_OUT, C_IN, 3, 3), jnp.float32)
    p["b1"] = 0.1 * jax.random.normal(ks[1], (C_OUT,), jnp.float32)
    p["g1"] = 1.0 + 0.1 * jax.random.normal(ks[2], (C_OUT,), jnp.float32)
    p["be1"] = 0.1 * jax.random.normal(ks[3], (C_OUT,), jnp.float32)
    p["w2"] = 0.1 * jax.random.normal(ks[4], (C_OUT, C_OUT, 3, 3), jnp.float32)
    p["b2"] = 0.1 * jax.random.normal(ks[5], (C_OUT,), jnp.float32)
    p["g2"] = 1.0 + 0.1 * jax.random.normal(ks[6], (C_OUT,), jnp.float32)
    p["be2"] = 0.1 * jax.random.normal(ks[7], (C_OUT,), jnp.float32)
    p["ws"] = 0.1 * jax.random.normal(ks[8], (C_OUT, C_IN, 1, 1), jnp.float32)
    p["bs"] = 0.1 * jax.random.normal(ks[9], (C_OUT,), jnp.float32)
    p["wt"] = 0.1 * jax.random.normal(ks[10], (2 * C_OUT, T_CH), jnp.float32)  # nn.Linear [out, in]
    p["bt"] = 0.1 * jax.random.normal(ks[11], (2 * C_OUT,), jnp.float32)
    return p


def ref_forward(x, params, temb):
    """Pure-JAX reference mirroring the PyTorch forward (NCHW)."""
    def conv(x, w, b, pad):
        y = jax.lax.conv_general_dilated(
            x, w, window_strides=(1, 1), padding=((pad, pad), (pad, pad)),
            dimension_numbers=("NCHW", "OIHW", "NCHW"))
        return y + b[None, :, None, None]

    def gn(x, gamma, beta, groups, eps=EPS):
        bsz, c, hh, ww = x.shape
        xg = x.reshape(bsz, groups, c // groups, hh, ww)
        mean = xg.mean(axis=(2, 3, 4), keepdims=True)
        var = ((xg - mean) ** 2).mean(axis=(2, 3, 4), keepdims=True)
        xn = ((xg - mean) / jnp.sqrt(var + eps)).reshape(bsz, c, hh, ww)
        return xn * gamma[None, :, None, None] + beta[None, :, None, None]

    silu = lambda v: v * jax.nn.sigmoid(v)
    y = gn(conv(x, params["w1"], params["b1"], 1), params["g1"], params["be1"], GROUPS)
    t = silu(temb) @ params["wt"].T + params["bt"]
    scale, shift = t[:, :C_OUT], t[:, C_OUT:]
    y = y * (scale[:, :, None, None] + 1.0) + shift[:, :, None, None]
    y = silu(y)
    y = conv(y, params["w2"], params["b2"], 1)
    y = gn(y, params["g2"], params["be2"], GROUPS)
    y = silu(y)
    return y + conv(x, params["ws"], params["bs"], 0)


if __name__ == "__main__":
    key = jax.random.PRNGKey(0)
    kx, kt, kp = jax.random.split(key, 3)
    x = jax.random.normal(kx, (B, C_IN, H, W), jnp.float32)
    temb = jax.random.normal(kt, (B, T_CH), jnp.float32)
    params = init_params(kp)

    out = jax.jit(resblock_forward)(x, params, temb)
    out = jax.block_until_ready(out)

    ref = ref_forward(x, params, temb)
    assert out.shape == (B, C_OUT, H, W), out.shape
    max_err = float(jnp.max(jnp.abs(out - ref)))
    assert jnp.allclose(out, ref, atol=1e-4, rtol=1e-4), f"max |err| = {max_err}"
    print("KERNEL_OK")
</pallas_src>

<mosaic_0001>
module attributes {stable_mosaic.version = 11 : i64} {
  func.func @kernel(%arg0: i32, %arg1: memref<8x512xf32, #tpu.memory_space<vmem>>, %arg2: memref<16x72xf32, #tpu.memory_space<vmem>>, %arg3: memref<8x72xf32, #tpu.memory_space<vmem>>, %arg4: memref<8x7xf32, #tpu.memory_space<vmem>>, %arg5: memref<8x4xf32, #tpu.memory_space<vmem>>, %arg6: memref<9x512xf32, #tpu.memory_space<vmem>>, %arg7: memref<8x8xf32, #tpu.memory_space<vmem>>, %arg8: memref<512x2xf32, #tpu.memory_space<vmem>>, %arg9: memref<2x512xf32, #tpu.memory_space<vmem>>, %arg10: memref<8x512xf32, #tpu.memory_space<vmem>>) attributes {dimension_semantics = [#tpu.dimension_semantics<arbitrary>], iteration_bounds = array<i64: 1>, scalar_prefetch = 0 : i64, scratch_operands = 0 : i64, tpu.core_type = #tpu.core_type<tc>, window_params = [{pipeline_mode = #tpu.pipeline_mode<synchronous>, transform_indices = @transform_0, window_bounds = array<i64: 8, 512>}, {pipeline_mode = #tpu.pipeline_mode<synchronous>, transform_indices = @transform_1, window_bounds = array<i64: 16, 72>}, {pipeline_mode = #tpu.pipeline_mode<synchronous>, transform_indices = @transform_2, window_bounds = array<i64: 8, 72>}, {pipeline_mode = #tpu.pipeline_mode<synchronous>, transform_indices = @transform_3, window_bounds = array<i64: 8, 7>}, {pipeline_mode = #tpu.pipeline_mode<synchronous>, transform_indices = @transform_4, window_bounds = array<i64: 8, 4>}, {pipeline_mode = #tpu.pipeline_mode<synchronous>, transform_indices = @transform_5, window_bounds = array<i64: 9, 512>}, {pipeline_mode = #tpu.pipeline_mode<synchronous>, transform_indices = @transform_6, window_bounds = array<i64: 8, 8>}, {pipeline_mode = #tpu.pipeline_mode<synchronous>, transform_indices = @transform_7, window_bounds = array<i64: 512, 2>}, {pipeline_mode = #tpu.pipeline_mode<synchronous>, transform_indices = @transform_8, window_bounds = array<i64: 2, 512>}, {pipeline_mode = #tpu.pipeline_mode<synchronous>, transform_indices = @transform_9, window_bounds = array<i64: 8, 512>}]} {
    %c0 = arith.constant 0 : index
    %c0_0 = arith.constant 0 : index
    %0 = vector.load %arg1[%c0, %c0_0] : memref<8x512xf32, #tpu.memory_space<vmem>>, vector<8x512xf32>
    %c0_1 = arith.constant 0 : index
    %c0_2 = arith.constant 0 : index
    %1 = vector.load %arg6[%c0_1, %c0_2] : memref<9x512xf32, #tpu.memory_space<vmem>>, vector<9x512xf32>
    %c0_3 = arith.constant 0 : index
    %c0_4 = arith.constant 0 : index
    %2 = vector.load %arg7[%c0_3, %c0_4] : memref<8x8xf32, #tpu.memory_space<vmem>>, vector<8x8xf32>
    %c0_5 = arith.constant 0 : index
    %c0_6 = arith.constant 0 : index
    %3 = vector.load %arg8[%c0_5, %c0_6] : memref<512x2xf32, #tpu.memory_space<vmem>>, vector<512x2xf32>
    %c0_7 = arith.constant 0 : index
    %c0_8 = arith.constant 0 : index
    %4 = vector.load %arg9[%c0_7, %c0_8] : memref<2x512xf32, #tpu.memory_space<vmem>>, vector<2x512xf32>
    %c0_9 = arith.constant 0 : index
    %c0_10 = arith.constant 0 : index
    %5 = vector.load %arg4[%c0_9, %c0_10] : memref<8x7xf32, #tpu.memory_space<vmem>>, vector<8x7xf32>
    %c0_11 = arith.constant 0 : index
    %c0_12 = arith.constant 0 : index
    %6 = vector.load %arg5[%c0_11, %c0_12] : memref<8x4xf32, #tpu.memory_space<vmem>>, vector<8x4xf32>
    %7 = vector.extract_strided_slice %5 {offsets = [0, 0], sizes = [8, 1], strides = [1, 1]} : vector<8x7xf32> to vector<8x1xf32>
    %8 = vector.extract_strided_slice %5 {offsets = [0, 1], sizes = [8, 1], strides = [1, 1]} : vector<8x7xf32> to vector<8x1xf32>
    %9 = vector.extract_strided_slice %5 {offsets = [0, 2], sizes = [8, 1], strides = [1, 1]} : vector<8x7xf32> to vector<8x1xf32>
    %10 = vector.extract_strided_slice %5 {offsets = [0, 3], sizes = [8, 1], strides = [1, 1]} : vector<8x7xf32> to vector<8x1xf32>
    %11 = vector.extract_strided_slice %5 {offsets = [0, 4], sizes = [8, 1], strides = [1, 1]} : vector<8x7xf32> to vector<8x1xf32>
    %12 = vector.extract_strided_slice %5 {offsets = [0, 5], sizes = [8, 1], strides = [1, 1]} : vector<8x7xf32> to vector<8x1xf32>
    %13 = vector.extract_strided_slice %5 {offsets = [0, 6], sizes = [8, 1], strides = [1, 1]} : vector<8x7xf32> to vector<8x1xf32>
    %14 = vector.extract_strided_slice %6 {offsets = [0, 0], sizes = [8, 2], strides = [1, 1]} : vector<8x4xf32> to vector<8x2xf32>
    %15 = vector.extract_strided_slice %6 {offsets = [0, 2], sizes = [8, 2], strides = [1, 1]} : vector<8x4xf32> to vector<8x2xf32>
    %c17_i32 = arith.constant 17 : i32
    %16 = tpu.dynamic_rotate %0 by %c17_i32 dim 1 : vector<8x512xf32>, i32 -> vector<8x512xf32>
    %17 = vector.extract_strided_slice %1 {offsets = [0, 0], sizes = [1, 512], strides = [1, 1]} : vector<9x512xf32> to vector<1x512xf32>
    %18 = vector.broadcast %17 : vector<1x512xf32> to vector<8x512xf32>
    %19 = arith.mulf %16, %18 : vector<8x512xf32>
    %c16_i32 = arith.constant 16 : i32
    %20 = tpu.dynamic_rotate %0 by %c16_i32 dim 1 : vector<8x512xf32>, i32 -> vector<8x512xf32>
    %21 = vector.extract_strided_slice %1 {offsets = [1, 0], sizes = [1, 512], strides = [1, 1]} : vector<9x512xf32> to vector<1x512xf32>
    %22 = vector.broadcast %21 : vector<1x512xf32> to vector<8x512xf32>
    %23 = arith.mulf %20, %22 : vector<8x512xf32>
    %c15_i32 = arith.constant 15 : i32
    %24 = tpu.dynamic_rotate %0 by %c15_i32 dim 1 : vector<8x512xf32>, i32 -> vector<8x512xf32>
    %25 = vector.extract_strided_slice %1 {offsets = [2, 0], sizes = [1, 512], strides = [1, 1]} : vector<9x512xf32> to vector<1x512xf32>
    %26 = vector.broadcast %25 : vector<1x512xf32> to vector<8x512xf32>
    %27 = arith.mulf %24, %26 : vector<8x512xf32>
    %c1_i32 = arith.constant 1 : i32
    %28 = tpu.dynamic_rotate %0 by %c1_i32 dim 1 : vector<8x512xf32>, i32 -> vector<8x512xf32>
    %29 = vector.extract_strided_slice %1 {offsets = [3, 0], sizes = [1, 512], strides = [1, 1]} : vector<9x512xf32> to vector<1x512xf32>
    %30 = vector.broadcast %29 : vector<1x512xf32> to vector<8x512xf32>
    %31 = arith.mulf %28, %30 : vector<8x512xf32>
    %c511_i32 = arith.constant 511 : i32
    %32 = tpu.dynamic_rotate %0 by %c511_i32 dim 1 : vector<8x512xf32>, i32 -> vector<8x512xf32>
    %33 = vector.extract_strided_slice %1 {offsets = [5, 0], sizes = [1, 512], strides = [1, 1]} : vector<9x512xf32> to vector<1x512xf32>
    %34 = vector.broadcast %33 : vector<1x512xf32> to vector<8x512xf32>
    %35 = arith.mulf %32, %34 : vector<8x512xf32>
    %c497_i32 = arith.constant 497 : i32
    %36 = tpu.dynamic_rotate %0 by %c497_i32 dim 1 : vector<8x512xf32>, i32 -> vector<8x512xf32>
    %37 = vector.extract_strided_slice %1 {offsets = [6, 0], sizes = [1, 512], strides = [1, 1]} : vector<9x512xf32> to vector<1x512xf32>
    %38 = vector.broadcast %37 : vector<1x512xf32> to vector<8x512xf32>
    %39 = arith.mulf %36, %38 : vector<8x512xf32>
    %c496_i32 = arith.constant 496 : i32
    %40 = tpu.dynamic_rotate %0 by %c496_i32 dim 1 : vector<8x512xf32>, i32 -> vector<8x512xf32>
    %41 = vector.extract_strided_slice %1 {offsets = [7, 0], sizes = [1, 512], strides = [1, 1]} : vector<9x512xf32> to vector<1x512xf32>
    %42 = vector.broadcast %41 : vector<1x512xf32> to vector<8x512xf32>
    %43 = arith.mulf %40, %42 : vector<8x512xf32>
    %c495_i32 = arith.constant 495 : i32
    %44 = tpu.dynamic_rotate %0 by %c495_i32 dim 1 : vector<8x512xf32>, i32 -> vector<8x512xf32>
    %45 = vector.extract_strided_slice %1 {offsets = [8, 0], sizes = [1, 512], strides = [1, 1]} : vector<9x512xf32> to vector<1x512xf32>
    %46 = vector.broadcast %45 : vector<1x512xf32> to vector<8x512xf32>
    %47 = arith.mulf %44, %46 : vector<8x512xf32>
    %48 = tpu.concatenate %19, %23, %27, %31, %0, %35, %39, %43, %47 in 0 : vector<8x512xf32>, vector<8x512xf32>, vector<8x512xf32>, vector<8x512xf32>, vector<8x512xf32>, vector<8x512xf32>, vector<8x512xf32>, vector<8x512xf32>, vector<8x512xf32> -> vector<72x512xf32>
    %c0_13 = arith.constant 0 : index
    %c0_14 = arith.constant 0 : index
    %49 = vector.load %arg2[%c0_13, %c0_14] : memref<16x72xf32, #tpu.memory_space<vmem>>, vector<16x72xf32>
    %cst = arith.constant dense<0.000000e+00> : vector<16x512xf32>
    %50 = tpu.matmul %49, %48, %cst {dimension_numbers = #tpu.dot_dimension_numbers<[1], [0], [0], [1], [0, 0, 1, 1], [], []>} : vector<16x72xf32>, vector<72x512xf32>, vector<16x512xf32> -> vector<16x512xf32>
    %51 = vector.extract_strided_slice %50 {offsets = [0, 0], sizes = [8, 512], strides = [1, 1]} : vector<16x512xf32> to vector<8x512xf32>
    %52 = vector.broadcast %7 : vector<8x1xf32> to vector<8x512xf32>
    %53 = arith.addf %51, %52 : vector<8x512xf32>
    %54 = vector.extract_strided_slice %50 {offsets = [8, 0], sizes = [8, 512], strides = [1, 1]} : vector<16x512xf32> to vector<8x512xf32>
    %55 = vector.broadcast %13 : vector<8x1xf32> to vector<8x512xf32>
    %56 = arith.addf %54, %55 : vector<8x512xf32>
    %cst_15 = arith.constant dense<0.000000e+00> : vector<8x2xf32>
    %57 = tpu.matmul %53, %3, %cst_15 {dimension_numbers = #tpu.dot_dimension_numbers<[1], [0], [0], [1], [0, 0, 1, 1], [], []>} : vector<8x512xf32>, vector<512x2xf32>, vector<8x2xf32> -> vector<8x2xf32>
    %58 = arith.mulf %53, %53 : vector<8x512xf32>
    %cst_16 = arith.constant dense<0.000000e+00> : vector<8x2xf32>
    %59 = tpu.matmul %58, %3, %cst_16 {dimension_numbers = #tpu.dot_dimension_numbers<[1], [0], [0], [1], [0, 0, 1, 1], [], []>} : vector<8x512xf32>, vector<512x2xf32>, vector<8x2xf32> -> vector<8x2xf32>
    %60 = tpu.concatenate %57, %59 in 1 : vector<8x2xf32>, vector<8x2xf32> -> vector<8x4xf32>
    %cst_17 = arith.constant dense<0.000000e+00> : vector<8x4xf32>
    %61 = tpu.matmul %2, %60, %cst_17 {dimension_numbers = #tpu.dot_dimension_numbers<[1], [0], [0], [1], [0, 0, 1, 1], [], []>} : vector<8x8xf32>, vector<8x4xf32>, vector<8x4xf32> -> vector<8x4xf32>
    %62 = vector.extract_strided_slice %61 {offsets = [0, 0], sizes = [8, 2], strides = [1, 1]} : vector<8x4xf32> to vector<8x2xf32>
    %63 = vector.extract_strided_slice %61 {offsets = [0, 2], sizes = [8, 2], strides = [1, 1]} : vector<8x4xf32> to vector<8x2xf32>
    %64 = arith.mulf %62, %62 : vector<8x2xf32>
    %65 = arith.subf %63, %64 : vector<8x2xf32>
    %cst_18 = arith.constant 0.000000e+00 : f32
    %66 = vector.broadcast %cst_18 : f32 to vector<8x2xf32>
    %67 = arith.maximumf %65, %66 : vector<8x2xf32>
    %cst_19 = arith.constant 9.99999974E-6 : f32
    %68 = vector.broadcast %cst_19 : f32 to vector<8x2xf32>
    %69 = arith.addf %67, %68 : vector<8x2xf32>
    %70 = math.rsqrt %69 : vector<8x2xf32>
    %71 = vector.broadcast %8 : vector<8x1xf32> to vector<8x2xf32>
    %72 = arith.mulf %70, %71 : vector<8x2xf32>
    %73 = arith.mulf %72, %14 : vector<8x2xf32>
    %74 = vector.broadcast %9 : vector<8x1xf32> to vector<8x2xf32>
    %75 = arith.mulf %74, %14 : vector<8x2xf32>
    %76 = arith.addf %75, %15 : vector<8x2xf32>
    %77 = arith.mulf %62, %73 : vector<8x2xf32>
    %78 = arith.subf %76, %77 : vector<8x2xf32>
    %79 = tpu.concatenate %73, %78 in 0 : vector<8x2xf32>, vector<8x2xf32> -> vector<16x2xf32>
    %cst_20 = arith.constant dense<0.000000e+00> : vector<16x512xf32>
    %80 = tpu.matmul %79, %4, %cst_20 {dimension_numbers = #tpu.dot_dimension_numbers<[1], [0], [0], [1], [0, 0, 1, 1], [], []>} : vector<16x2xf32>, vector<2x512xf32>, vector<16x512xf32> -> vector<16x512xf32>
    %81 = vector.extract_strided_slice %80 {offsets = [0, 0], sizes = [8, 512], strides = [1, 1]} : vector<16x512xf32> to vector<8x512xf32>
    %82 = arith.mulf %53, %81 : vector<8x512xf32>
    %83 = vector.extract_strided_slice %80 {offsets = [8, 0], sizes = [8, 512], strides = [1, 1]} : vector<16x512xf32> to vector<8x512xf32>
    %84 = arith.addf %82, %83 : vector<8x512xf32>
    %85 = arith.negf %84 : vector<8x512xf32>
    %86 = math.exp %85 : vector<8x512xf32>
    %cst_21 = arith.constant 1.000000e+00 : f32
    %87 = vector.broadcast %cst_21 : f32 to vector<8x512xf32>
    %88 = arith.addf %87, %86 : vector<8x512xf32>
    %89 = arith.divf %87, %88 : vector<8x512xf32>
    %90 = arith.mulf %84, %89 : vector<8x512xf32>
    %c17_i32_22 = arith.constant 17 : i32
    %91 = tpu.dynamic_rotate %90 by %c17_i32_22 dim 1 : vector<8x512xf32>, i32 -> vector<8x512xf32>
    %92 = vector.extract_strided_slice %1 {offsets = [0, 0], sizes = [1, 512], strides = [1, 1]} : vector<9x512xf32> to vector<1x512xf32>
    %93 = vector.broadcast %92 : vector<1x512xf32> to vector<8x512xf32>
    %94 = arith.mulf %91, %93 : vector<8x512xf32>
    %c16_i32_23 = arith.constant 16 : i32
    %95 = tpu.dynamic_rotate %90 by %c16_i32_23 dim 1 : vector<8x512xf32>, i32 -> vector<8x512xf32>
    %96 = vector.extract_strided_slice %1 {offsets = [1, 0], sizes = [1, 512], strides = [1, 1]} : vector<9x512xf32> to vector<1x512xf32>
    %97 = vector.broadcast %96 : vector<1x512xf32> to vector<8x512xf32>
    %98 = arith.mulf %95, %97 : vector<8x512xf32>
    %c15_i32_24 = arith.constant 15 : i32
    %99 = tpu.dynamic_rotate %90 by %c15_i32_24 dim 1 : vector<8x512xf32>, i32 -> vector<8x512xf32>
    %100 = vector.extract_strided_slice %1 {offsets = [2, 0], sizes = [1, 512], strides = [1, 1]} : vector<9x512xf32> to vector<1x512xf32>
    %101 = vector.broadcast %100 : vector<1x512xf32> to vector<8x512xf32>
    %102 = arith.mulf %99, %101 : vector<8x512xf32>
    %c1_i32_25 = arith.constant 1 : i32
    %103 = tpu.dynamic_rotate %90 by %c1_i32_25 dim 1 : vector<8x512xf32>, i32 -> vector<8x512xf32>
    %104 = vector.extract_strided_slice %1 {offsets = [3, 0], sizes = [1, 512], strides = [1, 1]} : vector<9x512xf32> to vector<1x512xf32>
    %105 = vector.broadcast %104 : vector<1x512xf32> to vector<8x512xf32>
    %106 = arith.mulf %103, %105 : vector<8x512xf32>
    %c511_i32_26 = arith.constant 511 : i32
    %107 = tpu.dynamic_rotate %90 by %c511_i32_26 dim 1 : vector<8x512xf32>, i32 -> vector<8x512xf32>
    %108 = vector.extract_strided_slice %1 {offsets = [5, 0], sizes = [1, 512], strides = [1, 1]} : vector<9x512xf32> to vector<1x512xf32>
    %109 = vector.broadcast %108 : vector<1x512xf32> to vector<8x512xf32>
    %110 = arith.mulf %107, %109 : vector<8x512xf32>
    %c497_i32_27 = arith.constant 497 : i32
    %111 = tpu.dynamic_rotate %90 by %c497_i32_27 dim 1 : vector<8x512xf32>, i32 -> vector<8x512xf32>
    %112 = vector.extract_strided_slice %1 {offsets = [6, 0], sizes = [1, 512], strides = [1, 1]} : vector<9x512xf32> to vector<1x512xf32>
    %113 = vector.broadcast %112 : vector<1x512xf32> to vector<8x512xf32>
    %114 = arith.mulf %111, %113 : vector<8x512xf32>
    %c496_i32_28 = arith.constant 496 : i32
    %115 = tpu.dynamic_rotate %90 by %c496_i32_28 dim 1 : vector<8x512xf32>, i32 -> vector<8x512xf32>
    %116 = vector.extract_strided_slice %1 {offsets = [7, 0], sizes = [1, 512], strides = [1, 1]} : vector<9x512xf32> to vector<1x512xf32>
    %117 = vector.broadcast %116 : vector<1x512xf32> to vector<8x512xf32>
    %118 = arith.mulf %115, %117 : vector<8x512xf32>
    %c495_i32_29 = arith.constant 495 : i32
    %119 = tpu.dynamic_rotate %90 by %c495_i32_29 dim 1 : vector<8x512xf32>, i32 -> vector<8x512xf32>
    %120 = vector.extract_strided_slice %1 {offsets = [8, 0], sizes = [1, 512], strides = [1, 1]} : vector<9x512xf32> to vector<1x512xf32>
    %121 = vector.broadcast %120 : vector<1x512xf32> to vector<8x512xf32>
    %122 = arith.mulf %119, %121 : vector<8x512xf32>
    %123 = tpu.concatenate %94, %98, %102, %106, %90, %110, %114, %118, %122 in 0 : vector<8x512xf32>, vector<8x512xf32>, vector<8x512xf32>, vector<8x512xf32>, vector<8x512xf32>, vector<8x512xf32>, vector<8x512xf32>, vector<8x512xf32>, vector<8x512xf32> -> vector<72x512xf32>
    %c0_30 = arith.constant 0 : index
    %c0_31 = arith.constant 0 : index
    %124 = vector.load %arg3[%c0_30, %c0_31] : memref<8x72xf32, #tpu.memory_space<vmem>>, vector<8x72xf32>
    %cst_32 = arith.constant dense<0.000000e+00> : vector<8x512xf32>
    %125 = tpu.matmul %124, %123, %cst_32 {dimension_numbers = #tpu.dot_dimension_numbers<[1], [0], [0], [1], [0, 0, 1, 1], [], []>} : vector<8x72xf32>, vector<72x512xf32>, vector<8x512xf32> -> vector<8x512xf32>
    %126 = vector.broadcast %10 : vector<8x1xf32> to vector<8x512xf32>
    %127 = arith.addf %125, %126 : vector<8x512xf32>
    %cst_33 = arith.constant dense<0.000000e+00> : vector<8x2xf32>
    %128 = tpu.matmul %127, %3, %cst_33 {dimension_numbers = #tpu.dot_dimension_numbers<[1], [0], [0], [1], [0, 0, 1, 1], [], []>} : vector<8x512xf32>, vector<512x2xf32>, vector<8x2xf32> -> vector<8x2xf32>
    %129 = arith.mulf %127, %127 : vector<8x512xf32>
    %cst_34 = arith.constant dense<0.000000e+00> : vector<8x2xf32>
    %130 = tpu.matmul %129, %3, %cst_34 {dimension_numbers = #tpu.dot_dimension_numbers<[1], [0], [0], [1], [0, 0, 1, 1], [], []>} : vector<8x512xf32>, vector<512x2xf32>, vector<8x2xf32> -> vector<8x2xf32>
    %131 = tpu.concatenate %128, %130 in 1 : vector<8x2xf32>, vector<8x2xf32> -> vector<8x4xf32>
    %cst_35 = arith.constant dense<0.000000e+00> : vector<8x4xf32>
    %132 = tpu.matmul %2, %131, %cst_35 {dimension_numbers = #tpu.dot_dimension_numbers<[1], [0], [0], [1], [0, 0, 1, 1], [], []>} : vector<8x8xf32>, vector<8x4xf32>, vector<8x4xf32> -> vector<8x4xf32>
    %133 = vector.extract_strided_slice %132 {offsets = [0, 0], sizes = [8, 2], strides = [1, 1]} : vector<8x4xf32> to vector<8x2xf32>
    %134 = vector.extract_strided_slice %132 {offsets = [0, 2], sizes = [8, 2], strides = [1, 1]} : vector<8x4xf32> to vector<8x2xf32>
    %135 = arith.mulf %133, %133 : vector<8x2xf32>
    %136 = arith.subf %134, %135 : vector<8x2xf32>
    %cst_36 = arith.constant 0.000000e+00 : f32
    %137 = vector.broadcast %cst_36 : f32 to vector<8x2xf32>
    %138 = arith.maximumf %136, %137 : vector<8x2xf32>
    %cst_37 = arith.constant 9.99999974E-6 : f32
    %139 = vector.broadcast %cst_37 : f32 to vector<8x2xf32>
    %140 = arith.addf %138, %139 : vector<8x2xf32>
    %141 = math.rsqrt %140 : vector<8x2xf32>
    %142 = vector.broadcast %11 : vector<8x1xf32> to vector<8x2xf32>
    %143 = arith.mulf %141, %142 : vector<8x2xf32>
    %144 = vector.shape_cast %12 : vector<8x1xf32> to vector<8x1xf32>
    %145 = vector.broadcast %144 : vector<8x1xf32> to vector<8x2xf32>
    %146 = arith.mulf %133, %143 : vector<8x2xf32>
    %147 = arith.subf %145, %146 : vector<8x2xf32>
    %148 = tpu.concatenate %143, %147 in 0 : vector<8x2xf32>, vector<8x2xf32> -> vector<16x2xf32>
    %cst_38 = arith.constant dense<0.000000e+00> : vector<16x512xf32>
    %149 = tpu.matmul %148, %4, %cst_38 {dimension_numbers = #tpu.dot_dimension_numbers<[1], [0], [0], [1], [0, 0, 1, 1], [], []>} : vector<16x2xf32>, vector<2x512xf32>, vector<16x512xf32> -> vector<16x512xf32>
    %150 = vector.extract_strided_slice %149 {offsets = [0, 0], sizes = [8, 512], strides = [1, 1]} : vector<16x512xf32> to vector<8x512xf32>
    %151 = arith.mulf %127, %150 : vector<8x512xf32>
    %152 = vector.extract_strided_slice %149 {offsets = [8, 0], sizes = [8, 512], strides = [1, 1]} : vector<16x512xf32> to vector<8x512xf32>
    %153 = arith.addf %151, %152 : vector<8x512xf32>
    %154 = arith.negf %153 : vector<8x512xf32>
    %155 = math.exp %154 : vector<8x512xf32>
    %cst_39 = arith.constant 1.000000e+00 : f32
    %156 = vector.broadcast %cst_39 : f32 to vector<8x512xf32>
    %157 = arith.addf %156, %155 : vector<8x512xf32>
    %158 = arith.divf %156, %157 : vector<8x512xf32>
    %159 = arith.mulf %153, %158 : vector<8x512xf32>
    %160 = arith.addf %159, %56 : vector<8x512xf32>
    %c0_40 = arith.constant 0 : index
    %c0_41 = arith.constant 0 : index
    %161 = vector.load %arg10[%c0_40, %c0_41] : memref<8x512xf32, #tpu.memory_space<vmem>>, vector<8x512xf32>
    tpu.vector_store %arg10[%c0_40, %c0_41], %160 {strides = array<i32>} : memref<8x512xf32, #tpu.memory_space<vmem>>, vector<8x512xf32>,
    return
  }
  func.func @transform_0(%arg0: i32) -> (i32, i32) {
    %c0_i32 = arith.constant 0 : i32
    %c0_i32_0 = arith.constant 0 : i32
    %c0_i32_1 = arith.constant 0 : i32
    return %c0_i32, %c0_i32_0 : i32, i32
  }
  func.func @transform_1(%arg0: i32) -> (i32, i32) {
    %c0_i32 = arith.constant 0 : i32
    %c0_i32_0 = arith.constant 0 : i32
    %c0_i32_1 = arith.constant 0 : i32
    return %c0_i32, %c0_i32_0 : i32, i32
  }
  func.func @transform_2(%arg0: i32) -> (i32, i32) {
    %c0_i32 = arith.constant 0 : i32
    %c0_i32_0 = arith.constant 0 : i32
    %c0_i32_1 = arith.constant 0 : i32
    return %c0_i32, %c0_i32_0 : i32, i32
  }
  func.func @transform_3(%arg0: i32) -> (i32, i32) {
    %c0_i32 = arith.constant 0 : i32
    %c0_i32_0 = arith.constant 0 : i32
    %c0_i32_1 = arith.constant 0 : i32
    return %c0_i32, %c0_i32_0 : i32, i32
  }
  func.func @transform_4(%arg0: i32) -> (i32, i32) {
    %c0_i32 = arith.constant 0 : i32
    %c0_i32_0 = arith.constant 0 : i32
    %c0_i32_1 = arith.constant 0 : i32
    return %c0_i32, %c0_i32_0 : i32, i32
  }
  func.func @transform_5(%arg0: i32) -> (i32, i32) {
    %c0_i32 = arith.constant 0 : i32
    %c0_i32_0 = arith.constant 0 : i32
    %c0_i32_1 = arith.constant 0 : i32
    return %c0_i32, %c0_i32_0 : i32, i32
  }
  func.func @transform_6(%arg0: i32) -> (i32, i32) {
    %c0_i32 = arith.constant 0 : i32
    %c0_i32_0 = arith.constant 0 : i32
    %c0_i32_1 = arith.constant 0 : i32
    return %c0_i32, %c0_i32_0 : i32, i32
  }
  func.func @transform_7(%arg0: i32) -> (i32, i32) {
    %c0_i32 = arith.constant 0 : i32
    %c0_i32_0 = arith.constant 0 : i32
    %c0_i32_1 = arith.constant 0 : i32
    return %c0_i32, %c0_i32_0 : i32, i32
  }
  func.func @transform_8(%arg0: i32) -> (i32, i32) {
    %c0_i32 = arith.constant 0 : i32
    %c0_i32_0 = arith.constant 0 : i32
    %c0_i32_1 = arith.constant 0 : i32
    return %c0_i32, %c0_i32_0 : i32, i32
  }
  func.func @transform_9(%arg0: i32) -> (i32, i32) {
    %c0_i32 = arith.constant 0 : i32
    %c0_i32_0 = arith.constant 0 : i32
    %c0_i32_1 = arith.constant 0 : i32
    return %c0_i32, %c0_i32_0 : i32, i32
  }
}

</mosaic_0001>

<llo_original>
// kernel: resblock_forward.1
$region0: #{resblock_forward.1}
  #allocation0 [shape = 'u32[]', space=smem, size = 0x4, offset = 0x4, fixed_abs, tag = 'smem constant byte address 0x4 - core index']
  #allocation1 [shape = 'u32[144,128]{1,0:T(1,128)}', space=vmem, size = 0x12000, scoped, tag = 'internal scratch']
  %s0 = inlined_call_operand.vmem [shape: f32[8,512], index: 0, kind: input, shape index: {}]
  %s1 = inlined_call_operand.vmem [shape: f32[16,72], index: 1, kind: input, shape index: {}]
  %s2 = inlined_call_operand.vmem [shape: f32[8,72], index: 2, kind: input, shape index: {}]
  %s3 = inlined_call_operand.vmem [shape: f32[8,7], index: 3, kind: input, shape index: {}]
  %s4 = inlined_call_operand.vmem [shape: f32[8,4], index: 4, kind: input, shape index: {}]
  %s5 = inlined_call_operand.vmem [shape: f32[9,512], index: 5, kind: input, shape index: {}]
  %s6 = inlined_call_operand.vmem [shape: f32[8,8], index: 6, kind: input, shape index: {}]
  %s7 = inlined_call_operand.vmem [shape: f32[512,2], index: 7, kind: input, shape index: {}]
  %s8 = inlined_call_operand.vmem [shape: f32[2,512], index: 8, kind: input, shape index: {}]
  %s9 = inlined_call_operand.vmem [shape: f32[8,512], index: 9, kind: output, shape index: {}]
  %s10 = sld [smem:[#allocation0]]
  $region46: #{resblock_forward.1} parent=0
    _
  %s12 = ssub.s32 1, %s10
  %s13 = scalar_select 0, %s12, %s10
  // Predicated region
  $region2: #{resblock_forward.1} parent=0 // pred_check
    _
  $region3: #{resblock_forward.1} parent=0 // pred_check_branch
    %15 = sbr.rel (0) target = $region5
  $region4: #{resblock_forward.1} parent=0 // pred_region
    _
  $region5: #{resblock_forward.1} parent=0 // pred_fallthru
    _
  // Predicated region
  $region6: #{resblock_forward.1} parent=0 // pred_check
    _
  $region7: #{resblock_forward.1} parent=0 // pred_check_branch
    %17 = sbr.rel (0) target = $region9
  $region8: #{resblock_forward.1} parent=0 // pred_region
    _
  $region9: #{resblock_forward.1} parent=0 // pred_fallthru
    _
  // Predicated region
  $region10: #{resblock_forward.1} parent=0 // pred_check
    _
  $region11: #{resblock_forward.1} parent=0 // pred_check_branch
    %19 = sbr.rel (0) target = $region13
  $region12: #{resblock_forward.1} parent=0 // pred_region
    _
  $region13: #{resblock_forward.1} parent=0 // pred_fallthru
    _
  // Predicated region
  $region14: #{resblock_forward.1} parent=0 // pred_check
    _
  $region15: #{resblock_forward.1} parent=0 // pred_check_branch
    %21 = sbr.rel (0) target = $region17
  $region16: #{resblock_forward.1} parent=0 // pred_region
    _
  $region17: #{resblock_forward.1} parent=0 // pred_fallthru
    _
  // Predicated region
  $region18: #{resblock_forward.1} parent=0 // pred_check
    _
  $region19: #{resblock_forward.1} parent=0 // pred_check_branch
    %23 = sbr.rel (0) target = $region21
  $region20: #{resblock_forward.1} parent=0 // pred_region
    _
  $region21: #{resblock_forward.1} parent=0 // pred_fallthru
    _
  // Predicated region
  $region22: #{resblock_forward.1} parent=0 // pred_check
    _
  $region23: #{resblock_forward.1} parent=0 // pred_check_branch
    %25 = sbr.rel (0) target = $region25
  $region24: #{resblock_forward.1} parent=0 // pred_region
    _
  $region25: #{resblock_forward.1} parent=0 // pred_fallthru
    _
  // Predicated region
  $region26: #{resblock_forward.1} parent=0 // pred_check
    _
  $region27: #{resblock_forward.1} parent=0 // pred_check_branch
    %27 = sbr.rel (0) target = $region29
  $region28: #{resblock_forward.1} parent=0 // pred_region
    _
  $region29: #{resblock_forward.1} parent=0 // pred_fallthru
    _
  // Predicated region
  $region30: #{resblock_forward.1} parent=0 // pred_check
    _
  $region31: #{resblock_forward.1} parent=0 // pred_check_branch
    %29 = sbr.rel (0) target = $region33
  $region32: #{resblock_forward.1} parent=0 // pred_region
    _
  $region33: #{resblock_forward.1} parent=0 // pred_fallthru
    _
  // Predicated region
  $region34: #{resblock_forward.1} parent=0 // pred_check
    _
  $region35: #{resblock_forward.1} parent=0 // pred_check_branch
    %31 = sbr.rel (0) target = $region37
  $region36: #{resblock_forward.1} parent=0 // pred_region
    _
  $region37: #{resblock_forward.1} parent=0 // pred_fallthru
    _
  %v32 = vld [vmem:[%s0] sm:$0xff]
  %v33 = vld [vmem:[%s0 + $0x8] sm:$0xff]
  %v34 = vld [vmem:[%s0 + $0x10] sm:$0xff]
  %v35 = vld [vmem:[%s0 + $0x18] sm:$0xff]
  %v36 = vld [vmem:[%s5] sm:$0xff]
  %v37 = vld [vmem:[%s5 + $0x8] sm:$0xff]
  %v38 = vld [vmem:[%s5 + $0x10] sm:$0xff]
  %v39 = vld [vmem:[%s5 + $0x18] sm:$0xff]
  %v40 = vld [vmem:[%s5 + $0x20] sm:$0x1]
  %v41 = vld [vmem:[%s5 + $0x28] sm:$0x1]
  %v42 = vld [vmem:[%s5 + $0x30] sm:$0x1]
  %v43 = vld [vmem:[%s5 + $0x38] sm:$0x1]
  %v44 = vld [vmem:[%s6] sm:$0xff]
  %v45 = vld [vmem:[%s7] sm:$0xff]
  %v46 = vld [vmem:[%s7 + $0x8] sm:$0xff]
  %v47 = vld [vmem:[%s7 + $0x10] sm:$0xff]
  %v48 = vld [vmem:[%s7 + $0x18] sm:$0xff]
  %v49 = vld [vmem:[%s7 + $0x20] sm:$0xff]
  %v50 = vld [vmem:[%s7 + $0x28] sm:$0xff]
  %v51 = vld [vmem:[%s7 + $0x30] sm:$0xff]
  %v52 = vld [vmem:[%s7 + $0x38] sm:$0xff]
  %v53 = vld [vmem:[%s7 + $0x40] sm:$0xff]
  %v54 = vld [vmem:[%s7 + $0x48] sm:$0xff]
  %v55 = vld [vmem:[%s7 + $0x50] sm:$0xff]
  %v56 = vld [vmem:[%s7 + $0x58] sm:$0xff]
  %v57 = vld [vmem:[%s7 + $0x60] sm:$0xff]
  %v58 = vld [vmem:[%s7 + $0x68] sm:$0xff]
  %v59 = vld [vmem:[%s7 + $0x70] sm:$0xff]
  %v60 = vld [vmem:[%s7 + $0x78] sm:$0xff]
  %v61 = vld [vmem:[%s7 + $0x80] sm:$0xff]
  %v62 = vld [vmem:[%s7 + $0x88] sm:$0xff]
  %v63 = vld [vmem:[%s7 + $0x90] sm:$0xff]
  %v64 = vld [vmem:[%s7 + $0x98] sm:$0xff]
  %v65 = vld [vmem:[%s7 + $0xa0] sm:$0xff]
  %v66 = vld [vmem:[%s7 + $0xa8] sm:$0xff]
  %v67 = vld [vmem:[%s7 + $0xb0] sm:$0xff]
  %v68 = vld [vmem:[%s7 + $0xb8] sm:$0xff]
  %v69 = vld [vmem:[%s7 + $0xc0] sm:$0xff]
  %v70 = vld [vmem:[%s7 + $0xc8] sm:$0xff]
  %v71 = vld [vmem:[%s7 + $0xd0] sm:$0xff]
  %v72 = vld [vmem:[%s7 + $0xd8] sm:$0xff]
  %v73 = vld [vmem:[%s7 + $0xe0] sm:$0xff]
  %v74 = vld [vmem:[%s7 + $0xe8] sm:$0xff]
  %v75 = vld [vmem:[%s7 + $0xf0] sm:$0xff]
  %v76 = vld [vmem:[%s7 + $0xf8] sm:$0xff]
  %v77 = vld [vmem:[%s7 + $0x100] sm:$0xff]
  %v78 = vld [vmem:[%s7 + $0x108] sm:$0xff]
  %v79 = vld [vmem:[%s7 + $0x110] sm:$0xff]
  %v80 = vld [vmem:[%s7 + $0x118] sm:$0xff]
  %v81 = vld [vmem:[%s7 + $0x120] sm:$0xff]
  %v82 = vld [vmem:[%s7 + $0x128] sm:$0xff]
  %v83 = vld [vmem:[%s7 + $0x130] sm:$0xff]
  %v84 = vld [vmem:[%s7 + $0x138] sm:$0xff]
  %v85 = vld [vmem:[%s7 + $0x140] sm:$0xff]
  %v86 = vld [vmem:[%s7 + $0x148] sm:$0xff]
  %v87 = vld [vmem:[%s7 + $0x150] sm:$0xff]
  %v88 = vld [vmem:[%s7 + $0x158] sm:$0xff]
  %v89 = vld [vmem:[%s7 + $0x160] sm:$0xff]
  %v90 = vld [vmem:[%s7 + $0x168] sm:$0xff]
  %v91 = vld [vmem:[%s7 + $0x170] sm:$0xff]
  %v92 = vld [vmem:[%s7 + $0x178] sm:$0xff]
  %v93 = vld [vmem:[%s7 + $0x180] sm:$0xff]
  %v94 = vld [vmem:[%s7 + $0x188] sm:$0xff]
  %v95 = vld [vmem:[%s7 + $0x190] sm:$0xff]
  %v96 = vld [vmem:[%s7 + $0x198] sm:$0xff]
  %v97 = vld [vmem:[%s7 + $0x1a0] sm:$0xff]
  %v98 = vld [vmem:[%s7 + $0x1a8] sm:$0xff]
  %v99 = vld [vmem:[%s7 + $0x1b0] sm:$0xff]
  %v100 = vld [vmem:[%s7 + $0x1b8] sm:$0xff]
  %v101 = vld [vmem:[%s7 + $0x1c0] sm:$0xff]
  %v102 = vld [vmem:[%s7 + $0x1c8] sm:$0xff]
  %v103 = vld [vmem:[%s7 + $0x1d0] sm:$0xff]
  %v104 = vld [vmem:[%s7 + $0x1d8] sm:$0xff]
  %v105 = vld [vmem:[%s7 + $0x1e0] sm:$0xff]
  %v106 = vld [vmem:[%s7 + $0x1e8] sm:$0xff]
  %v107 = vld [vmem:[%s7 + $0x1f0] sm:$0xff]
  %v108 = vld [vmem:[%s7 + $0x1f8] sm:$0xff]
  %v109 = vld [vmem:[%s8] sm:$0xff]
  %v110 = vld [vmem:[%s3] sm:$0xff]
  %v111 = vld [vmem:[%s4] sm:$0xff]
  %112 = vrot.lane.b32.xlu0 %v32, 17
  %v113 = vpop.permute.xlu0 %112
  %114 = vrot.lane.b32.xlu0 %v33, 17
  %v115 = vpop.permute.xlu0 %114
  %116 = vrot.lane.b32.xlu0 %v34, 17
  %v117 = vpop.permute.xlu0 %116
  %118 = vrot.lane.b32.xlu0 %v35, 17
  %v119 = vpop.permute.xlu0 %118
  %v120 = vlaneseq
  %v121 = vand.u32 %v120, 127
  %vm122 = vcmp.lt.s32.totalorder %v121, 17
  %v123 = vsel %vm122, %v117, %v119
  %v124 = vsel %vm122, %v115, %v117
  %v125 = vsel %vm122, %v113, %v115
  %v126 = vsel %vm122, %v119, %v113
  %v127 = vlaneseq
  %v128 = vshrl.u32 %v127, 7
  %v129 = vsub.s32 0, %v128
  %v130 = vrot.slane %v36, %v129
  %v131 = vlaneseq
  %v132 = vshrl.u32 %v131, 7
  %v133 = vsub.s32 0, %v132
  %v134 = vrot.slane %v37, %v133
  %v135 = vlaneseq
  %v136 = vshrl.u32 %v135, 7
  %v137 = vsub.s32 0, %v136
  %v138 = vrot.slane %v38, %v137
  %v139 = vlaneseq
  %v140 = vshrl.u32 %v139, 7
  %v141 = vsub.s32 0, %v140
  %v142 = vrot.slane %v39, %v141
  %v143 = vmul.f32 %v126, %v130
  %v144 = vmul.f32 %v125, %v134
  %v145 = vmul.f32 %v124, %v138
  %v146 = vmul.f32 %v123, %v142
  %147 = vrot.lane.b32.xlu0 %v32, 16
  %v148 = vpop.permute.xlu0 %147
  %149 = vrot.lane.b32.xlu0 %v33, 16
  %v150 = vpop.permute.xlu0 %149
  %151 = vrot.lane.b32.xlu0 %v34, 16
  %v152 = vpop.permute.xlu0 %151
  %153 = vrot.lane.b32.xlu0 %v35, 16
  %v154 = vpop.permute.xlu0 %153
  %vm155 = vcmp.lt.s32.totalorder %v121, 16
  %v156 = vsel %vm155, %v152, %v154
  %v157 = vsel %vm155, %v150, %v152
  %v158 = vsel %vm155, %v148, %v150
  %v159 = vsel %vm155, %v154, %v148
  %v160 = vlaneseq
  %v161 = vshrl.u32 %v160, 7
  %v162 = vsub.s32 1, %v161
  %v163 = vrot.slane %v36, %v162
  %v164 = vlaneseq
  %v165 = vshrl.u32 %v164, 7
  %v166 = vsub.s32 1, %v165
  %v167 = vrot.slane %v37, %v166
  %v168 = vlaneseq
  %v169 = vshrl.u32 %v168, 7
  %v170 = vsub.s32 1, %v169
  %v171 = vrot.slane %v38, %v170
  %v172 = vlaneseq
  %v173 = vshrl.u32 %v172, 7
  %v174 = vsub.s32 1, %v173
  %v175 = vrot.slane %v39, %v174
  %v176 = vmul.f32 %v159, %v163
  %v177 = vmul.f32 %v158, %v167
  %v178 = vmul.f32 %v157, %v171
  %v179 = vmul.f32 %v156, %v175
  %180 = vrot.lane.b32.xlu0 %v32, 15
  %v181 = vpop.permute.xlu0 %180
  %182 = vrot.lane.b32.xlu0 %v33, 15
  %v183 = vpop.permute.xlu0 %182
  %184 = vrot.lane.b32.xlu0 %v34, 15
  %v185 = vpop.permute.xlu0 %184
  %186 = vrot.lane.b32.xlu0 %v35, 15
  %v187 = vpop.permute.xlu0 %186
  %vm188 = vcmp.lt.s32.totalorder %v121, 15
  %v189 = vsel %vm188, %v185, %v187
  %v190 = vsel %vm188, %v183, %v185
  %v191 = vsel %vm188, %v181, %v183
  %v192 = vsel %vm188, %v187, %v181
  %v193 = vlaneseq
  %v194 = vshrl.u32 %v193, 7
  %v195 = vsub.s32 2, %v194
  %v196 = vrot.slane %v36, %v195
  %v197 = vlaneseq
  %v198 = vshrl.u32 %v197, 7
  %v199 = vsub.s32 2, %v198
  %v200 = vrot.slane %v37, %v199
  %v201 = vlaneseq
  %v202 = vshrl.u32 %v201, 7
  %v203 = vsub.s32 2, %v202
  %v204 = vrot.slane %v38, %v203
  %v205 = vlaneseq
  %v206 = vshrl.u32 %v205, 7
  %v207 = vsub.s32 2, %v206
  %v208 = vrot.slane %v39, %v207
  %v209 = vmul.f32 %v192, %v196
  %v210 = vmul.f32 %v191, %v200
  %v211 = vmul.f32 %v190, %v204
  %v212 = vmul.f32 %v189, %v208
  %213 = vrot.lane.b32.xlu0 %v32, 1
  %v214 = vpop.permute.xlu0 %213
  %215 = vrot.lane.b32.xlu0 %v33, 1
  %v216 = vpop.permute.xlu0 %215
  %217 = vrot.lane.b32.xlu0 %v34, 1
  %v218 = vpop.permute.xlu0 %217
  %219 = vrot.lane.b32.xlu0 %v35, 1
  %v220 = vpop.permute.xlu0 %219
  %vm221 = vcmp.lt.s32.totalorder %v121, 1
  %v222 = vsel %vm221, %v218, %v220
  %v223 = vsel %vm221, %v216, %v218
  %v224 = vsel %vm221, %v214, %v216
  %v225 = vsel %vm221, %v220, %v214
  %v226 = vlaneseq
  %v227 = vshrl.u32 %v226, 7
  %v228 = vsub.s32 3, %v227
  %v229 = vrot.slane %v36, %v228
  %v230 = vlaneseq
  %v231 = vshrl.u32 %v230, 7
  %v232 = vsub.s32 3, %v231
  %v233 = vrot.slane %v37, %v232
  %v234 = vlaneseq
  %v235 = vshrl.u32 %v234, 7
  %v236 = vsub.s32 3, %v235
  %v237 = vrot.slane %v38, %v236
  %v238 = vlaneseq
  %v239 = vshrl.u32 %v238, 7
  %v240 = vsub.s32 3, %v239
  %v241 = vrot.slane %v39, %v240
  %v242 = vmul.f32 %v225, %v229
  %v243 = vmul.f32 %v224, %v233
  %v244 = vmul.f32 %v223, %v237
  %v245 = vmul.f32 %v222, %v241
  %246 = vrot.lane.b32.xlu0 %v32, 127
  %v247 = vpop.permute.xlu0 %246
  %248 = vrot.lane.b32.xlu0 %v33, 127
  %v249 = vpop.permute.xlu0 %248
  %250 = vrot.lane.b32.xlu0 %v34, 127
  %v251 = vpop.permute.xlu0 %250
  %252 = vrot.lane.b32.xlu0 %v35, 127
  %v253 = vpop.permute.xlu0 %252
  %vm254 = vcmp.lt.s32.totalorder %v121, 127
  %v255 = vsel %vm254, %v251, %v253
  %v256 = vsel %vm254, %v249, %v251
  %v257 = vsel %vm254, %v247, %v249
  %v258 = vsel %vm254, %v253, %v247
  %v259 = vlaneseq
  %v260 = vshrl.u32 %v259, 7
  %v261 = vsub.s32 5, %v260
  %v262 = vrot.slane %v36, %v261
  %v263 = vlaneseq
  %v264 = vshrl.u32 %v263, 7
  %v265 = vsub.s32 5, %v264
  %v266 = vrot.slane %v37, %v265
  %v267 = vlaneseq
  %v268 = vshrl.u32 %v267, 7
  %v269 = vsub.s32 5, %v268
  %v270 = vrot.slane %v38, %v269
  %v271 = vlaneseq
  %v272 = vshrl.u32 %v271, 7
  %v273 = vsub.s32 5, %v272
  %v274 = vrot.slane %v39, %v273
  %v275 = vmul.f32 %v257, %v262
  %v276 = vmul.f32 %v256, %v266
  %v277 = vmul.f32 %v255, %v270
  %v278 = vmul.f32 %v258, %v274
  %279 = vrot.lane.b32.xlu0 %v32, 113
  %v280 = vpop.permute.xlu0 %279
  %281 = vrot.lane.b32.xlu0 %v33, 113
  %v282 = vpop.permute.xlu0 %281
  %283 = vrot.lane.b32.xlu0 %v34, 113
  %v284 = vpop.permute.xlu0 %283
  %285 = vrot.lane.b32.xlu0 %v35, 113
  %v286 = vpop.permute.xlu0 %285
  %vm287 = vcmp.lt.s32.totalorder %v121, 113
  %v288 = vsel %vm287, %v284, %v286
  %v289 = vsel %vm287, %v282, %v284
  %v290 = vsel %vm287, %v280, %v282
  %v291 = vsel %vm287, %v286, %v280
  %v292 = vlaneseq
  %v293 = vshrl.u32 %v292, 7
  %v294 = vsub.s32 6, %v293
  %v295 = vrot.slane %v36, %v294
  %v296 = vlaneseq
  %v297 = vshrl.u32 %v296, 7
  %v298 = vsub.s32 6, %v297
  %v299 = vrot.slane %v37, %v298
  %v300 = vlaneseq
  %v301 = vshrl.u32 %v300, 7
  %v302 = vsub.s32 6, %v301
  %v303 = vrot.slane %v38, %v302
  %v304 = vlaneseq
  %v305 = vshrl.u32 %v304, 7
  %v306 = vsub.s32 6, %v305
  %v307 = vrot.slane %v39, %v306
  %v308 = vmul.f32 %v290, %v295
  %v309 = vmul.f32 %v289, %v299
  %v310 = vmul.f32 %v288, %v303
  %v311 = vmul.f32 %v291, %v307
  %312 = vrot.lane.b32.xlu0 %v32, 112
  %v313 = vpop.permute.xlu0 %312
  %314 = vrot.lane.b32.xlu0 %v33, 112
  %v315 = vpop.permute.xlu0 %314
  %316 = vrot.lane.b32.xlu0 %v34, 112
  %v317 = vpop.permute.xlu0 %316
  %318 = vrot.lane.b32.xlu0 %v35, 112
  %v319 = vpop.permute.xlu0 %318
  %vm320 = vcmp.lt.s32.totalorder %v121, 112
  %v321 = vsel %vm320, %v317, %v319
  %v322 = vsel %vm320, %v315, %v317
  %v323 = vsel %vm320, %v313, %v315
  %v324 = vsel %vm320, %v319, %v313
  %v325 = vlaneseq
  %v326 = vshrl.u32 %v325, 7
  %v327 = vsub.s32 7, %v326
  %v328 = vrot.slane %v36, %v327
  %v329 = vlaneseq
  %v330 = vshrl.u32 %v329, 7
  %v331 = vsub.s32 7, %v330
  %v332 = vrot.slane %v37, %v331
  %v333 = vlaneseq
  %v334 = vshrl.u32 %v333, 7
  %v335 = vsub.s32 7, %v334
  %v336 = vrot.slane %v38, %v335
  %v337 = vlaneseq
  %v338 = vshrl.u32 %v337, 7
  %v339 = vsub.s32 7, %v338
  %v340 = vrot.slane %v39, %v339
  %v341 = vmul.f32 %v323, %v328
  %v342 = vmul.f32 %v322, %v332
  %v343 = vmul.f32 %v321, %v336
  %v344 = vmul.f32 %v324, %v340
  %345 = vrot.lane.b32.xlu0 %v32, 111
  %v346 = vpop.permute.xlu0 %345
  %347 = vrot.lane.b32.xlu0 %v33, 111
  %v348 = vpop.permute.xlu0 %347
  %349 = vrot.lane.b32.xlu0 %v34, 111
  %v350 = vpop.permute.xlu0 %349
  %351 = vrot.lane.b32.xlu0 %v35, 111
  %v352 = vpop.permute.xlu0 %351
  %vm353 = vcmp.lt.s32.totalorder %v121, 111
  %v354 = vsel %vm353, %v350, %v352
  %v355 = vsel %vm353, %v348, %v350
  %v356 = vsel %vm353, %v346, %v348
  %v357 = vsel %vm353, %v352, %v346
  %v358 = vlaneseq
  %v359 = vshrl.u32 %v358, 7
  %v360 = vsub.s32 0, %v359
  %v361 = vrot.slane %v40, %v360
  %v362 = vlaneseq
  %v363 = vshrl.u32 %v362, 7
  %v364 = vsub.s32 0, %v363
  %v365 = vrot.slane %v41, %v364
  %v366 = vlaneseq
  %v367 = vshrl.u32 %v366, 7
  %v368 = vsub.s32 0, %v367
  %v369 = vrot.slane %v42, %v368
  %v370 = vlaneseq
  %v371 = vshrl.u32 %v370, 7
  %v372 = vsub.s32 0, %v371
  %v373 = vrot.slane %v43, %v372
  %v374 = vmul.f32 %v356, %v361
  %v375 = vmul.f32 %v355, %v365
  %v376 = vmul.f32 %v354, %v369
  %v377 = vmul.f32 %v357, %v373
  %v378 = vld [vmem:[%s1] sm:$0xff]
  %v379 = vld [vmem:[%s1 + $0x8] sm:$0xff]
  %vm380 = vcmask 588800
  %v382 = vsel %vm380, %v378, 0
  %v385 = vsel %vm380, %v379, 0
  %387 = vmatprep.subr.mxu0 %v144
  %388 = vmatpush1.msra.mxu0 %v143
  %389 = vmatprep.subr.mxu0 %v177
  %390 = vmatpush1.msra.mxu0 %v176
  %391 = vmatprep.subr.mxu0 %v210
  %392 = vmatpush1.msra.mxu0 %v209
  %393 = vmatprep.subr.mxu0 %v243
  %394 = vmatpush1.msra.mxu0 %v242
  %395 = vmatprep.subr.mxu0 %v33
  %396 = vmatpush1.msra.mxu0 %v32
  %397 = vmatprep.subr.mxu0 %v276
  %398 = vmatpush1.msra.mxu0 %v275
  %399 = vmatprep.subr.mxu0 %v309
  %400 = vmatpush1.msra.mxu0 %v308
  %401 = vmatprep.subr.mxu0 %v342
  %402 = vmatpush1.msra.mxu0 %v341
  %403 = vmatprep.subr.mxu0 %v375
  %404 = vmatpush1.msra.mxu0 %v374
  %405 = vmatprep.subr.mxu0 0.0
  %406 = vmatpush1.msra.mxu0 0.0
  %407 = vmatprep.subr.mxu0 0.0
  %408 = vmatpush1.msra.mxu0 0.0
  %409 = vmatprep.subr.mxu0 0.0
  %410 = vmatpush1.msra.mxu0 0.0
  %411 = vmatprep.subr.mxu0 0.0
  %412 = vmatpush1.msra.mxu0 0.0
  %413 = vmatprep.subr.mxu0 0.0
  %414 = vmatpush1.msra.mxu0 0.0
  %415 = vmatprep.subr.mxu0 0.0
  %416 = vmatpush1.msra.mxu0 0.0
  %417 = vmatprep.subr.mxu0 0.0
  %418 = vmatpush1.msra.mxu0 0.0
  %419 = vmatprep.subr.mxu0 0.0
  %420 = vmatpush1.msra.mxu0 0.0
  %421 = vmatprep.subr.mxu0 0.0
  %422 = vmatpush1.msra.mxu0 0.0
  %423 = vmatprep.subr.mxu0 0.0
  %424 = vmatpush1.msra.mxu0 0.0
  %425 = vmatprep.subr.mxu0 0.0
  %426 = vmatpush1.msra.mxu0 0.0
  %427 = vmatprep.subr.mxu0 0.0
  %428 = vmatpush1.msra.mxu0 0.0
  %429 = vmatprep.subr.mxu0 0.0
  %430 = vmatpush1.msra.mxu0 0.0
  %431 = vmatprep.subr.mxu0 0.0
  %432 = vmatpush1.msra.mxu0 0.0
  %433 = vmatprep.subr.mxu0 0.0
  %434 = vmatpush1.msra.mxu0 0.0
  %435 = vmatprep.subr.mxu0 0.0
  %436 = vmatpush1.msra.mxu0 0.0
  %437 = vmatprep.subr.mxu0 0.0
  %438 = vmatpush1.msra.mxu0 0.0
  %439 = vmatprep.subr.mxu0 0.0
  %440 = vmatpush1.msra.mxu0 0.0
  %441 = vmatprep.subr.mxu0 0.0
  %442 = vmatpush1.msra.mxu0 0.0
  %443 = vmatprep.subr.mxu0 0.0
  %444 = vmatpush1.msra.mxu0 0.0
  %445 = vmatprep.subr.mxu0 0.0
  %446 = vmatpush1.msra.mxu0 0.0
  %447 = vmatprep.subr.mxu0 0.0
  %448 = vmatpush1.msra.mxu0 0.0
  %449 = vmatprep.subr.mxu0 0.0
  %450 = vmatpush1.msra.mxu0 0.0
  %451 = vmatprep.mubr.f32.mxu0 0.0
  %452 = vmatmul.mubr.f32.gmra.mrb[0].mxu0 %v382
  %v453 = vpop.f32.mrb[0].mxu0
  %v454 = vadd.f32 0.0, %v453
  %v455 = vpop.f32.mrb[0].mxu0
  %v456 = vadd.f32 0.0, %v455
  %457 = vmatprep.mubr.f32.mxu0 0.0
  %458 = vmatmul.mubr.f32.gmra.mrb[0].mxu0 %v385
  %v459 = vpop.f32.mrb[0].mxu0
  %v460 = vadd.f32 0.0, %v459
  %v461 = vpop.f32.mrb[0].mxu0
  %v462 = vadd.f32 0.0, %v461
  %463 = vdwg.mxu0
  %464 = vmatprep.subr.mxu0 %v146
  %465 = vmatpush1.msra.mxu0 %v145
  %466 = vmatprep.subr.mxu0 %v179
  %467 = vmatpush1.msra.mxu0 %v178
  %468 = vmatprep.subr.mxu0 %v212
  %469 = vmatpush1.msra.mxu0 %v211
  %470 = vmatprep.subr.mxu0 %v245
  %471 = vmatpush1.msra.mxu0 %v244
  %472 = vmatprep.subr.mxu0 %v35
  %473 = vmatpush1.msra.mxu0 %v34
  %474 = vmatprep.subr.mxu0 %v278
  %475 = vmatpush1.msra.mxu0 %v277
  %476 = vmatprep.subr.mxu0 %v311
  %477 = vmatpush1.msra.mxu0 %v310
  %478 = vmatprep.subr.mxu0 %v344
  %479 = vmatpush1.msra.mxu0 %v343
  %480 = vmatprep.subr.mxu0 %v377
  %481 = vmatpush1.msra.mxu0 %v376
  %482 = vmatprep.subr.mxu0 0.0
  %483 = vmatpush1.msra.mxu0 0.0
  %484 = vmatprep.subr.mxu0 0.0
  %485 = vmatpush1.msra.mxu0 0.0
  %486 = vmatprep.subr.mxu0 0.0
  %487 = vmatpush1.msra.mxu0 0.0
  %488 = vmatprep.subr.mxu0 0.0
  %489 = vmatpush1.msra.mxu0 0.0
  %490 = vmatprep.subr.mxu0 0.0
  %491 = vmatpush1.msra.mxu0 0.0
  %492 = vmatprep.subr.mxu0 0.0
  %493 = vmatpush1.msra.mxu0 0.0
  %494 = vmatprep.subr.mxu0 0.0
  %495 = vmatpush1.msra.mxu0 0.0
  %496 = vmatprep.subr.mxu0 0.0
  %497 = vmatpush1.msra.mxu0 0.0
  %498 = vmatprep.subr.mxu0 0.0
  %499 = vmatpush1.msra.mxu0 0.0
  %500 = vmatprep.subr.mxu0 0.0
  %501 = vmatpush1.msra.mxu0 0.0
  %502 = vmatprep.subr.mxu0 0.0
  %503 = vmatpush1.msra.mxu0 0.0
  %504 = vmatprep.subr.mxu0 0.0
  %505 = vmatpush1.msra.mxu0 0.0
  %506 = vmatprep.subr.mxu0 0.0
  %507 = vmatpush1.msra.mxu0 0.0
  %508 = vmatprep.subr.mxu0 0.0
  %509 = vmatpush1.msra.mxu0 0.0
  %510 = vmatprep.subr.mxu0 0.0
  %511 = vmatpush1.msra.mxu0 0.0
  %512 = vmatprep.subr.mxu0 0.0
  %513 = vmatpush1.msra.mxu0 0.0
  %514 = vmatprep.subr.mxu0 0.0
  %515 = vmatpush1.msra.mxu0 0.0
  %516 = vmatprep.subr.mxu0 0.0
  %517 = vmatpush1.msra.mxu0 0.0
  %518 = vmatprep.subr.mxu0 0.0
  %519 = vmatpush1.msra.mxu0 0.0
  %520 = vmatprep.subr.mxu0 0.0
  %521 = vmatpush1.msra.mxu0 0.0
  %522 = vmatprep.subr.mxu0 0.0
  %523 = vmatpush1.msra.mxu0 0.0
  %524 = vmatprep.subr.mxu0 0.0
  %525 = vmatpush1.msra.mxu0 0.0
  %526 = vmatprep.subr.mxu0 0.0
  %527 = vmatpush1.msra.mxu0 0.0
  %528 = vmatprep.mubr.f32.mxu0 0.0
  %529 = vmatmul.mubr.f32.gmra.mrb[0].mxu0 %v382
  %v530 = vpop.f32.mrb[0].mxu0
  %v531 = vadd.f32 0.0, %v530
  %v532 = vpop.f32.mrb[0].mxu0
  %v533 = vadd.f32 0.0, %v532
  %534 = vmatprep.mubr.f32.mxu0 0.0
  %535 = vmatmul.mubr.f32.gmra.mrb[0].mxu0 %v385
  %v536 = vpop.f32.mrb[0].mxu0
  %v537 = vadd.f32 0.0, %v536
  %v538 = vpop.f32.mrb[0].mxu0
  %v539 = vadd.f32 0.0, %v538
  %540 = vdwg.mxu0
  %542 = vset.pattern.permute.xlu0 0
  %543 = vperm.xlu0 %542, %v110
  %v544 = vpop.permute.xlu0 %543
  %v546 = vadd.f32 %v454, %v544
  %v547 = vadd.f32 %v456, %v544
  %v548 = vadd.f32 %v531, %v544
  %v549 = vadd.f32 %v533, %v544
  %550 = vset.pattern.permute.xlu0 6
  %551 = vperm.xlu0 %550, %v110
  %v552 = vpop.permute.xlu0 %551
  %v554 = vadd.f32 %v460, %v552
  %v555 = vadd.f32 %v462, %v552
  %v556 = vadd.f32 %v537, %v552
  %v557 = vadd.f32 %v539, %v552
  %558 = vmatprep.subr.mxu0 0.0
  %559 = vmatpush1.msra.mxu0 %v45
  %560 = vmatprep.subr.mxu0 0.0
  %561 = vmatpush1.msra.mxu0 %v46
  %562 = vmatprep.subr.mxu0 0.0
  %563 = vmatpush1.msra.mxu0 %v47
  %564 = vmatprep.subr.mxu0 0.0
  %565 = vmatpush1.msra.mxu0 %v48
  %566 = vmatprep.subr.mxu0 0.0
  %567 = vmatpush1.msra.mxu0 %v49
  %568 = vmatprep.subr.mxu0 0.0
  %569 = vmatpush1.msra.mxu0 %v50
  %570 = vmatprep.subr.mxu0 0.0
  %571 = vmatpush1.msra.mxu0 %v51
  %572 = vmatprep.subr.mxu0 0.0
  %573 = vmatpush1.msra.mxu0 %v52
  %574 = vmatprep.subr.mxu0 0.0
  %575 = vmatpush1.msra.mxu0 %v53
  %576 = vmatprep.subr.mxu0 0.0
  %577 = vmatpush1.msra.mxu0 %v54
  %578 = vmatprep.subr.mxu0 0.0
  %579 = vmatpush1.msra.mxu0 %v55
  %580 = vmatprep.subr.mxu0 0.0
  %581 = vmatpush1.msra.mxu0 %v56
  %582 = vmatprep.subr.mxu0 0.0
  %583 = vmatpush1.msra.mxu0 %v57
  %584 = vmatprep.subr.mxu0 0.0
  %585 = vmatpush1.msra.mxu0 %v58
  %586 = vmatprep.subr.mxu0 0.0
  %587 = vmatpush1.msra.mxu0 %v59
  %588 = vmatprep.subr.mxu0 0.0
  %589 = vmatpush1.msra.mxu0 %v60
  %590 = vmatprep.subr.mxu0 0.0
  %591 = vmatpush1.msra.mxu0 %v61
  %592 = vmatprep.subr.mxu0 0.0
  %593 = vmatpush1.msra.mxu0 %v62
  %594 = vmatprep.subr.mxu0 0.0
  %595 = vmatpush1.msra.mxu0 %v63
  %596 = vmatprep.subr.mxu0 0.0
  %597 = vmatpush1.msra.mxu0 %v64
  %598 = vmatprep.subr.mxu0 0.0
  %599 = vmatpush1.msra.mxu0 %v65
  %600 = vmatprep.subr.mxu0 0.0
  %601 = vmatpush1.msra.mxu0 %v66
  %602 = vmatprep.subr.mxu0 0.0
  %603 = vmatpush1.msra.mxu0 %v67
  %604 = vmatprep.subr.mxu0 0.0
  %605 = vmatpush1.msra.mxu0 %v68
  %606 = vmatprep.subr.mxu0 0.0
  %607 = vmatpush1.msra.mxu0 %v69
  %608 = vmatprep.subr.mxu0 0.0
  %609 = vmatpush1.msra.mxu0 %v70
  %610 = vmatprep.subr.mxu0 0.0
  %611 = vmatpush1.msra.mxu0 %v71
  %612 = vmatprep.subr.mxu0 0.0
  %613 = vmatpush1.msra.mxu0 %v72
  %614 = vmatprep.subr.mxu0 0.0
  %615 = vmatpush1.msra.mxu0 %v73
  %616 = vmatprep.subr.mxu0 0.0
  %617 = vmatpush1.msra.mxu0 %v74
  %618 = vmatprep.subr.mxu0 0.0
  %619 = vmatpush1.msra.mxu0 %v75
  %620 = vmatprep.subr.mxu0 0.0
  %621 = vmatpush1.msra.mxu0 %v76
  %622 = vmatprep.mubr.f32.mxu0 %v547
  %623 = vmatmul.mubr.f32.gmra.mrb[0].mxu0 %v546
  %v624 = vpop.f32.mrb[0].mxu0
  %v625 = vadd.f32 0.0, %v624
  %v626 = vpop.f32.mrb[0].mxu0
  %627 = vdwg.mxu0
  %628 = vmatprep.subr.mxu0 0.0
  %629 = vmatpush1.msra.mxu0 %v77
  %630 = vmatprep.subr.mxu0 0.0
  %631 = vmatpush1.msra.mxu0 %v78
  %632 = vmatprep.subr.mxu0 0.0
  %633 = vmatpush1.msra.mxu0 %v79
  %634 = vmatprep.subr.mxu0 0.0
  %635 = vmatpush1.msra.mxu0 %v80
  %636 = vmatprep.subr.mxu0 0.0
  %637 = vmatpush1.msra.mxu0 %v81
  %638 = vmatprep.subr.mxu0 0.0
  %639 = vmatpush1.msra.mxu0 %v82
  %640 = vmatprep.subr.mxu0 0.0
  %641 = vmatpush1.msra.mxu0 %v83
  %642 = vmatprep.subr.mxu0 0.0
  %643 = vmatpush1.msra.mxu0 %v84
  %644 = vmatprep.subr.mxu0 0.0
  %645 = vmatpush1.msra.mxu0 %v85
  %646 = vmatprep.subr.mxu0 0.0
  %647 = vmatpush1.msra.mxu0 %v86
  %648 = vmatprep.subr.mxu0 0.0
  %649 = vmatpush1.msra.mxu0 %v87
  %650 = vmatprep.subr.mxu0 0.0
  %651 = vmatpush1.msra.mxu0 %v88
  %652 = vmatprep.subr.mxu0 0.0
  %653 = vmatpush1.msra.mxu0 %v89
  %654 = vmatprep.subr.mxu0 0.0
  %655 = vmatpush1.msra.mxu0 %v90
  %656 = vmatprep.subr.mxu0 0.0
  %657 = vmatpush1.msra.mxu0 %v91
  %658 = vmatprep.subr.mxu0 0.0
  %659 = vmatpush1.msra.mxu0 %v92
  %660 = vmatprep.subr.mxu0 0.0
  %661 = vmatpush1.msra.mxu0 %v93
  %662 = vmatprep.subr.mxu0 0.0
  %663 = vmatpush1.msra.mxu0 %v94
  %664 = vmatprep.subr.mxu0 0.0
  %665 = vmatpush1.msra.mxu0 %v95
  %666 = vmatprep.subr.mxu0 0.0
  %667 = vmatpush1.msra.mxu0 %v96
  %668 = vmatprep.subr.mxu0 0.0
  %669 = vmatpush1.msra.mxu0 %v97
  %670 = vmatprep.subr.mxu0 0.0
  %671 = vmatpush1.msra.mxu0 %v98
  %672 = vmatprep.subr.mxu0 0.0
  %673 = vmatpush1.msra.mxu0 %v99
  %674 = vmatprep.subr.mxu0 0.0
  %675 = vmatpush1.msra.mxu0 %v100
  %676 = vmatprep.subr.mxu0 0.0
  %677 = vmatpush1.msra.mxu0 %v101
  %678 = vmatprep.subr.mxu0 0.0
  %679 = vmatpush1.msra.mxu0 %v102
  %680 = vmatprep.subr.mxu0 0.0
  %681 = vmatpush1.msra.mxu0 %v103
  %682 = vmatprep.subr.mxu0 0.0
  %683 = vmatpush1.msra.mxu0 %v104
  %684 = vmatprep.subr.mxu0 0.0
  %685 = vmatpush1.msra.mxu0 %v105
  %686 = vmatprep.subr.mxu0 0.0
  %687 = vmatpush1.msra.mxu0 %v106
  %688 = vmatprep.subr.mxu0 0.0
  %689 = vmatpush1.msra.mxu0 %v107
  %690 = vmatprep.subr.mxu0 0.0
  %691 = vmatpush1.msra.mxu0 %v108
  %692 = vmatprep.mubr.f32.mxu0 %v549
  %693 = vmatmul.mubr.f32.gmra.mrb[0].mxu0 %v548
  %v694 = vpop.f32.mrb[0].mxu0
  %v695 = vadd.f32 %v625, %v694
  %v696 = vpop.f32.mrb[0].mxu0
  %697 = vdwg.mxu0
  %v698 = vmul.f32 %v546, %v546
  %v699 = vmul.f32 %v547, %v547
  %v700 = vmul.f32 %v548, %v548
  %v701 = vmul.f32 %v549, %v549
  %702 = vmatprep.subr.mxu0 0.0
  %703 = vmatpush1.msra.mxu0 %v45
  %704 = vmatprep.subr.mxu0 0.0
  %705 = vmatpush1.msra.mxu0 %v46
  %706 = vmatprep.subr.mxu0 0.0
  %707 = vmatpush1.msra.mxu0 %v47
  %708 = vmatprep.subr.mxu0 0.0
  %709 = vmatpush1.msra.mxu0 %v48
  %710 = vmatprep.subr.mxu0 0.0
  %711 = vmatpush1.msra.mxu0 %v49
  %712 = vmatprep.subr.mxu0 0.0
  %713 = vmatpush1.msra.mxu0 %v50
  %714 = vmatprep.subr.mxu0 0.0
  %715 = vmatpush1.msra.mxu0 %v51
  %716 = vmatprep.subr.mxu0 0.0
  %717 = vmatpush1.msra.mxu0 %v52
  %718 = vmatprep.subr.mxu0 0.0
  %719 = vmatpush1.msra.mxu0 %v53
  %720 = vmatprep.subr.mxu0 0.0
  %721 = vmatpush1.msra.mxu0 %v54
  %722 = vmatprep.subr.mxu0 0.0
  %723 = vmatpush1.msra.mxu0 %v55
  %724 = vmatprep.subr.mxu0 0.0
  %725 = vmatpush1.msra.mxu0 %v56
  %726 = vmatprep.subr.mxu0 0.0
  %727 = vmatpush1.msra.mxu0 %v57
  %728 = vmatprep.subr.mxu0 0.0
  %729 = vmatpush1.msra.mxu0 %v58
  %730 = vmatprep.subr.mxu0 0.0
  %731 = vmatpush1.msra.mxu0 %v59
  %732 = vmatprep.subr.mxu0 0.0
  %733 = vmatpush1.msra.mxu0 %v60
  %734 = vmatprep.subr.mxu0 0.0
  %735 = vmatpush1.msra.mxu0 %v61
  %736 = vmatprep.subr.mxu0 0.0
  %737 = vmatpush1.msra.mxu0 %v62
  %738 = vmatprep.subr.mxu0 0.0
  %739 = vmatpush1.msra.mxu0 %v63
  %740 = vmatprep.subr.mxu0 0.0
  %741 = vmatpush1.msra.mxu0 %v64
  %742 = vmatprep.subr.mxu0 0.0
  %743 = vmatpush1.msra.mxu0 %v65
  %744 = vmatprep.subr.mxu0 0.0
  %745 = vmatpush1.msra.mxu0 %v66
  %746 = vmatprep.subr.mxu0 0.0
  %747 = vmatpush1.msra.mxu0 %v67
  %748 = vmatprep.subr.mxu0 0.0
  %749 = vmatpush1.msra.mxu0 %v68
  %750 = vmatprep.subr.mxu0 0.0
  %751 = vmatpush1.msra.mxu0 %v69
  %752 = vmatprep.subr.mxu0 0.0
  %753 = vmatpush1.msra.mxu0 %v70
  %754 = vmatprep.subr.mxu0 0.0
  %755 = vmatpush1.msra.mxu0 %v71
  %756 = vmatprep.subr.mxu0 0.0
  %757 = vmatpush1.msra.mxu0 %v72
  %758 = vmatprep.subr.mxu0 0.0
  %759 = vmatpush1.msra.mxu0 %v73
  %760 = vmatprep.subr.mxu0 0.0
  %761 = vmatpush1.msra.mxu0 %v74
  %762 = vmatprep.subr.mxu0 0.0
  %763 = vmatpush1.msra.mxu0 %v75
  %764 = vmatprep.subr.mxu0 0.0
  %765 = vmatpush1.msra.mxu0 %v76
  %766 = vmatprep.mubr.f32.mxu0 %v699
  %767 = vmatmul.mubr.f32.gmra.mrb[0].mxu0 %v698
  %v768 = vpop.f32.mrb[0].mxu0
  %v769 = vadd.f32 0.0, %v768
  %v770 = vpop.f32.mrb[0].mxu0
  %771 = vdwg.mxu0
  %772 = vmatprep.subr.mxu0 0.0
  %773 = vmatpush1.msra.mxu0 %v77
  %774 = vmatprep.subr.mxu0 0.0
  %775 = vmatpush1.msra.mxu0 %v78
  %776 = vmatprep.subr.mxu0 0.0
  %777 = vmatpush1.msra.mxu0 %v79
  %778 = vmatprep.subr.mxu0 0.0
  %779 = vmatpush1.msra.mxu0 %v80
  %780 = vmatprep.subr.mxu0 0.0
  %781 = vmatpush1.msra.mxu0 %v81
  %782 = vmatprep.subr.mxu0 0.0
  %783 = vmatpush1.msra.mxu0 %v82
  %784 = vmatprep.subr.mxu0 0.0
  %785 = vmatpush1.msra.mxu0 %v83
  %786 = vmatprep.subr.mxu0 0.0
  %787 = vmatpush1.msra.mxu0 %v84
  %788 = vmatprep.subr.mxu0 0.0
  %789 = vmatpush1.msra.mxu0 %v85
  %790 = vmatprep.subr.mxu0 0.0
  %791 = vmatpush1.msra.mxu0 %v86
  %792 = vmatprep.subr.mxu0 0.0
  %793 = vmatpush1.msra.mxu0 %v87
  %794 = vmatprep.subr.mxu0 0.0
  %795 = vmatpush1.msra.mxu0 %v88
  %796 = vmatprep.subr.mxu0 0.0
  %797 = vmatpush1.msra.mxu0 %v89
  %798 = vmatprep.subr.mxu0 0.0
  %799 = vmatpush1.msra.mxu0 %v90
  %800 = vmatprep.subr.mxu0 0.0
  %801 = vmatpush1.msra.mxu0 %v91
  %802 = vmatprep.subr.mxu0 0.0
  %803 = vmatpush1.msra.mxu0 %v92
  %804 = vmatprep.subr.mxu0 0.0
  %805 = vmatpush1.msra.mxu0 %v93
  %806 = vmatprep.subr.mxu0 0.0
  %807 = vmatpush1.msra.mxu0 %v94
  %808 = vmatprep.subr.mxu0 0.0
  %809 = vmatpush1.msra.mxu0 %v95
  %810 = vmatprep.subr.mxu0 0.0
  %811 = vmatpush1.msra.mxu0 %v96
  %812 = vmatprep.subr.mxu0 0.0
  %813 = vmatpush1.msra.mxu0 %v97
  %814 = vmatprep.subr.mxu0 0.0
  %815 = vmatpush1.msra.mxu0 %v98
  %816 = vmatprep.subr.mxu0 0.0
  %817 = vmatpush1.msra.mxu0 %v99
  %818 = vmatprep.subr.mxu0 0.0
  %819 = vmatpush1.msra.mxu0 %v100
  %820 = vmatprep.subr.mxu0 0.0
  %821 = vmatpush1.msra.mxu0 %v101
  %822 = vmatprep.subr.mxu0 0.0
  %823 = vmatpush1.msra.mxu0 %v102
  %824 = vmatprep.subr.mxu0 0.0
  %825 = vmatpush1.msra.mxu0 %v103
  %826 = vmatprep.subr.mxu0 0.0
  %827 = vmatpush1.msra.mxu0 %v104
  %828 = vmatprep.subr.mxu0 0.0
  %829 = vmatpush1.msra.mxu0 %v105
  %830 = vmatprep.subr.mxu0 0.0
  %831 = vmatpush1.msra.mxu0 %v106
  %832 = vmatprep.subr.mxu0 0.0
  %833 = vmatpush1.msra.mxu0 %v107
  %834 = vmatprep.subr.mxu0 0.0
  %835 = vmatpush1.msra.mxu0 %v108
  %836 = vmatprep.mubr.f32.mxu0 %v701
  %837 = vmatmul.mubr.f32.gmra.mrb[0].mxu0 %v700
  %v838 = vpop.f32.mrb[0].mxu0
  %v839 = vadd.f32 %v769, %v838
  %v840 = vpop.f32.mrb[0].mxu0
  %841 = vdwg.mxu0
  %843 = vrot.lane.b32.xlu0 %v839, 2
  %v844 = vpop.permute.xlu0 %843
  %vm846 = vcmask 15360
  %v847 = vsel %vm846, %v695, %v844
  %vm848 = vcmask 64512
  %v850 = vsel %vm848, %v44, 0
  %852 = vmatprep.subr.mxu0 0.0
  %853 = vmatpush1.msra.mxu0 %v847
  %854 = vmatprep.subr.mxu0 0.0
  %855 = vmatpush1.msra.mxu0 0.0
  %856 = vmatprep.subr.mxu0 0.0
  %857 = vmatpush1.msra.mxu0 0.0
  %858 = vmatprep.subr.mxu0 0.0
  %859 = vmatpush1.msra.mxu0 0.0
  %860 = vmatprep.subr.mxu0 0.0
  %861 = vmatpush1.msra.mxu0 0.0
  %862 = vmatprep.subr.mxu0 0.0
  %863 = vmatpush1.msra.mxu0 0.0
  %864 = vmatprep.subr.mxu0 0.0
  %865 = vmatpush1.msra.mxu0 0.0
  %866 = vmatprep.subr.mxu0 0.0
  %867 = vmatpush1.msra.mxu0 0.0
  %868 = vmatprep.subr.mxu0 0.0
  %869 = vmatpush1.msra.mxu0 0.0
  %870 = vmatprep.subr.mxu0 0.0
  %871 = vmatpush1.msra.mxu0 0.0
  %872 = vmatprep.subr.mxu0 0.0
  %873 = vmatpush1.msra.mxu0 0.0
  %874 = vmatprep.subr.mxu0 0.0
  %875 = vmatpush1.msra.mxu0 0.0
  %876 = vmatprep.subr.mxu0 0.0
  %877 = vmatpush1.msra.mxu0 0.0
  %878 = vmatprep.subr.mxu0 0.0
  %879 = vmatpush1.msra.mxu0 0.0
  %880 = vmatprep.subr.mxu0 0.0
  %881 = vmatpush1.msra.mxu0 0.0
  %882 = vmatprep.subr.mxu0 0.0
  %883 = vmatpush1.msra.mxu0 0.0
  %884 = vmatprep.subr.mxu0 0.0
  %885 = vmatpush1.msra.mxu0 0.0
  %886 = vmatprep.subr.mxu0 0.0
  %887 = vmatpush1.msra.mxu0 0.0
  %888 = vmatprep.subr.mxu0 0.0
  %889 = vmatpush1.msra.mxu0 0.0
  %890 = vmatprep.subr.mxu0 0.0
  %891 = vmatpush1.msra.mxu0 0.0
  %892 = vmatprep.subr.mxu0 0.0
  %893 = vmatpush1.msra.mxu0 0.0
  %894 = vmatprep.subr.mxu0 0.0
  %895 = vmatpush1.msra.mxu0 0.0
  %896 = vmatprep.subr.mxu0 0.0
  %897 = vmatpush1.msra.mxu0 0.0
  %898 = vmatprep.subr.mxu0 0.0
  %899 = vmatpush1.msra.mxu0 0.0
  %900 = vmatprep.subr.mxu0 0.0
  %901 = vmatpush1.msra.mxu0 0.0
  %902 = vmatprep.subr.mxu0 0.0
  %903 = vmatpush1.msra.mxu0 0.0
  %904 = vmatprep.subr.mxu0 0.0
  %905 = vmatpush1.msra.mxu0 0.0
  %906 = vmatprep.subr.mxu0 0.0
  %907 = vmatpush1.msra.mxu0 0.0
  %908 = vmatprep.subr.mxu0 0.0
  %909 = vmatpush1.msra.mxu0 0.0
  %910 = vmatprep.subr.mxu0 0.0
  %911 = vmatpush1.msra.mxu0 0.0
  %912 = vmatprep.subr.mxu0 0.0
  %913 = vmatpush1.msra.mxu0 0.0
  %914 = vmatprep.subr.mxu0 0.0
  %915 = vmatpush1.msra.mxu0 0.0
  %916 = vmatprep.mubr.f32.mxu0 0.0
  %917 = vmatmul.mubr.f32.gmra.mrb[0].mxu0 %v850
  %v918 = vpop.f32.mrb[0].mxu0
  %v919 = vadd.f32 0.0, %v918
  %v920 = vpop.f32.mrb[0].mxu0
  %921 = vdwg.mxu0
  %v922 = vmul.f32 %v919, %v919
  %924 = vrot.lane.b32.xlu0 %v922, 2
  %v925 = vpop.permute.xlu0 %924
  %v927 = vsub.f32 %v919, %v925
  %v928 = vmax.f32 %v927, 0.0
  %v929 = vadd.f32 %v928, 1e-05
  %v930 = vrsqrt.pop %v929
  %931 = vset.pattern.permute.xlu0 1
  %932 = vperm.xlu0 %931, %v110
  %v933 = vpop.permute.xlu0 %932
  %v935 = vmul.f32 %v930, %v933
  %937 = vrot.lane.b32.xlu0 %v111, 2
  %v938 = vpop.permute.xlu0 %937
  %v940 = vmul.f32 %v935, %v938
  %941 = vset.pattern.permute.xlu0 2
  %942 = vperm.xlu0 %941, %v110
  %v943 = vpop.permute.xlu0 %942
  %v945 = vmul.f32 %v943, %v111
  %946 = vrot.lane.b32.xlu0 %v111, 126
  %v947 = vpop.permute.xlu0 %946
  %v949 = vadd.f32 %v945, %v947
  %951 = vrot.lane.b32.xlu0 %v940, 126
  %v952 = vpop.permute.xlu0 %951
  %v954 = vmul.f32 %v919, %v952
  %v955 = vsub.f32 %v949, %v954
  %957 = vrot.lane.b32.xlu0 %v955, 2
  %v958 = vpop.permute.xlu0 %957
  %959 = vrot.lane.b32.xlu0 %v958, 126
  %v960 = vpop.permute.xlu0 %959
  %v962 = vcombine.high %v109, %v109
  %v964 = vunpack.c.l.s4 1983009808
  %v965 = vunpack.c.0.s8 %v964
  %v966 = vlaneseq
  %v967 = vshrl.u32 %v966, 7
  %v968 = vsub.s32 %v965, %v967
  %v969 = vrot.slane %v109, %v968
  %v971 = vunpack.c.l.s4 1983009808
  %v972 = vunpack.c.0.s8 %v971
  %v973 = vlaneseq
  %v974 = vshrl.u32 %v973, 7
  %v975 = vsub.s32 %v972, %v974
  %v976 = vrot.slane %v962, %v975
  %v977 = vcombine.high %v969, %v969
  %v978 = vcombine.high %v976, %v976
  %v979 = vsel %vm846, %v952, 0
  %v981 = vsel %vm846, %v960, 0
  %vm983 = vcmask 1041408
  %v984 = vsel %vm983, %v969, 0
  %v986 = vsel %vm983, %v977, 0
  %v988 = vsel %vm983, %v976, 0
  %v990 = vsel %vm983, %v978, 0
  %992 = vmatprep.subr.mxu0 %v986
  %993 = vmatpush1.msra.mxu0 %v984
  %994 = vmatprep.subr.mxu0 0.0
  %995 = vmatpush1.msra.mxu0 0.0
  %996 = vmatprep.subr.mxu0 0.0
  %997 = vmatpush1.msra.mxu0 0.0
  %998 = vmatprep.subr.mxu0 0.0
  %999 = vmatpush1.msra.mxu0 0.0
  %1000 = vmatprep.subr.mxu0 0.0
  %1001 = vmatpush1.msra.mxu0 0.0
  %1002 = vmatprep.subr.mxu0 0.0
  %1003 = vmatpush1.msra.mxu0 0.0
  %1004 = vmatprep.subr.mxu0 0.0
  %1005 = vmatpush1.msra.mxu0 0.0
  %1006 = vmatprep.subr.mxu0 0.0
  %1007 = vmatpush1.msra.mxu0 0.0
  %1008 = vmatprep.subr.mxu0 0.0
  %1009 = vmatpush1.msra.mxu0 0.0
  %1010 = vmatprep.subr.mxu0 0.0
  %1011 = vmatpush1.msra.mxu0 0.0
  %1012 = vmatprep.subr.mxu0 0.0
  %1013 = vmatpush1.msra.mxu0 0.0
  %1014 = vmatprep.subr.mxu0 0.0
  %1015 = vmatpush1.msra.mxu0 0.0
  %1016 = vmatprep.subr.mxu0 0.0
  %1017 = vmatpush1.msra.mxu0 0.0
  %1018 = vmatprep.subr.mxu0 0.0
  %1019 = vmatpush1.msra.mxu0 0.0
  %1020 = vmatprep.subr.mxu0 0.0
  %1021 = vmatpush1.msra.mxu0 0.0
  %1022 = vmatprep.subr.mxu0 0.0
  %1023 = vmatpush1.msra.mxu0 0.0
  %1024 = vmatprep.subr.mxu0 0.0
  %1025 = vmatpush1.msra.mxu0 0.0
  %1026 = vmatprep.subr.mxu0 0.0
  %1027 = vmatpush1.msra.mxu0 0.0
  %1028 = vmatprep.subr.mxu0 0.0
  %1029 = vmatpush1.msra.mxu0 0.0
  %1030 = vmatprep.subr.mxu0 0.0
  %1031 = vmatpush1.msra.mxu0 0.0
  %1032 = vmatprep.subr.mxu0 0.0
  %1033 = vmatpush1.msra.mxu0 0.0
  %1034 = vmatprep.subr.mxu0 0.0
  %1035 = vmatpush1.msra.mxu0 0.0
  %1036 = vmatprep.subr.mxu0 0.0
  %1037 = vmatpush1.msra.mxu0 0.0
  %1038 = vmatprep.subr.mxu0 0.0
  %1039 = vmatpush1.msra.mxu0 0.0
  %1040 = vmatprep.subr.mxu0 0.0
  %1041 = vmatpush1.msra.mxu0 0.0
  %1042 = vmatprep.subr.mxu0 0.0
  %1043 = vmatpush1.msra.mxu0 0.0
  %1044 = vmatprep.subr.mxu0 0.0
  %1045 = vmatpush1.msra.mxu0 0.0
  %1046 = vmatprep.subr.mxu0 0.0
  %1047 = vmatpush1.msra.mxu0 0.0
  %1048 = vmatprep.subr.mxu0 0.0
  %1049 = vmatpush1.msra.mxu0 0.0
  %1050 = vmatprep.subr.mxu0 0.0
  %1051 = vmatpush1.msra.mxu0 0.0
  %1052 = vmatprep.subr.mxu0 0.0
  %1053 = vmatpush1.msra.mxu0 0.0
  %1054 = vmatprep.subr.mxu0 0.0
  %1055 = vmatpush1.msra.mxu0 0.0
  %1056 = vmatprep.mubr.f32.mxu0 0.0
  %1057 = vmatmul.mubr.f32.gmra.mrb[0].mxu0 %v979
  %v1058 = vpop.f32.mrb[0].mxu0
  %v1059 = vadd.f32 0.0, %v1058
  %v1060 = vpop.f32.mrb[0].mxu0
  %v1061 = vadd.f32 0.0, %v1060
  %1062 = vmatprep.mubr.f32.mxu0 0.0
  %1063 = vmatmul.mubr.f32.gmra.mrb[0].mxu0 %v981
  %v1064 = vpop.f32.mrb[0].mxu0
  %v1065 = vadd.f32 0.0, %v1064
  %v1066 = vpop.f32.mrb[0].mxu0
  %v1067 = vadd.f32 0.0, %v1066
  %1068 = vdwg.mxu0
  %1069 = vmatprep.subr.mxu0 %v990
  %1070 = vmatpush1.msra.mxu0 %v988
  %1071 = vmatprep.subr.mxu0 0.0
  %1072 = vmatpush1.msra.mxu0 0.0
  %1073 = vmatprep.subr.mxu0 0.0
  %1074 = vmatpush1.msra.mxu0 0.0
  %1075 = vmatprep.subr.mxu0 0.0
  %1076 = vmatpush1.msra.mxu0 0.0
  %1077 = vmatprep.subr.mxu0 0.0
  %1078 = vmatpush1.msra.mxu0 0.0
  %1079 = vmatprep.subr.mxu0 0.0
  %1080 = vmatpush1.msra.mxu0 0.0
  %1081 = vmatprep.subr.mxu0 0.0
  %1082 = vmatpush1.msra.mxu0 0.0
  %1083 = vmatprep.subr.mxu0 0.0
  %1084 = vmatpush1.msra.mxu0 0.0
  %1085 = vmatprep.subr.mxu0 0.0
  %1086 = vmatpush1.msra.mxu0 0.0
  %1087 = vmatprep.subr.mxu0 0.0
  %1088 = vmatpush1.msra.mxu0 0.0
  %1089 = vmatprep.subr.mxu0 0.0
  %1090 = vmatpush1.msra.mxu0 0.0
  %1091 = vmatprep.subr.mxu0 0.0
  %1092 = vmatpush1.msra.mxu0 0.0
  %1093 = vmatprep.subr.mxu0 0.0
  %1094 = vmatpush1.msra.mxu0 0.0
  %1095 = vmatprep.subr.mxu0 0.0
  %1096 = vmatpush1.msra.mxu0 0.0
  %1097 = vmatprep.subr.mxu0 0.0
  %1098 = vmatpush1.msra.mxu0 0.0
  %1099 = vmatprep.subr.mxu0 0.0
  %1100 = vmatpush1.msra.mxu0 0.0
  %1101 = vmatprep.subr.mxu0 0.0
  %1102 = vmatpush1.msra.mxu0 0.0
  %1103 = vmatprep.subr.mxu0 0.0
  %1104 = vmatpush1.msra.mxu0 0.0
  %1105 = vmatprep.subr.mxu0 0.0
  %1106 = vmatpush1.msra.mxu0 0.0
  %1107 = vmatprep.subr.mxu0 0.0
  %1108 = vmatpush1.msra.mxu0 0.0
  %1109 = vmatprep.subr.mxu0 0.0
  %1110 = vmatpush1.msra.mxu0 0.0
  %1111 = vmatprep.subr.mxu0 0.0
  %1112 = vmatpush1.msra.mxu0 0.0
  %1113 = vmatprep.subr.mxu0 0.0
  %1114 = vmatpush1.msra.mxu0 0.0
  %1115 = vmatprep.subr.mxu0 0.0
  %1116 = vmatpush1.msra.mxu0 0.0
  %1117 = vmatprep.subr.mxu0 0.0
  %1118 = vmatpush1.msra.mxu0 0.0
  %1119 = vmatprep.subr.mxu0 0.0
  %1120 = vmatpush1.msra.mxu0 0.0
  %1121 = vmatprep.subr.mxu0 0.0
  %1122 = vmatpush1.msra.mxu0 0.0
  %1123 = vmatprep.subr.mxu0 0.0
  %1124 = vmatpush1.msra.mxu0 0.0
  %1125 = vmatprep.subr.mxu0 0.0
  %1126 = vmatpush1.msra.mxu0 0.0
  %1127 = vmatprep.subr.mxu0 0.0
  %1128 = vmatpush1.msra.mxu0 0.0
  %1129 = vmatprep.subr.mxu0 0.0
  %1130 = vmatpush1.msra.mxu0 0.0
  %1131 = vmatprep.subr.mxu0 0.0
  %1132 = vmatpush1.msra.mxu0 0.0
  %1133 = vmatprep.mubr.f32.mxu0 0.0
  %1134 = vmatmul.mubr.f32.gmra.mrb[0].mxu0 %v979
  %v1135 = vpop.f32.mrb[0].mxu0
  %v1136 = vadd.f32 0.0, %v1135
  %v1137 = vpop.f32.mrb[0].mxu0
  %v1138 = vadd.f32 0.0, %v1137
  %1139 = vmatprep.mubr.f32.mxu0 0.0
  %1140 = vmatmul.mubr.f32.gmra.mrb[0].mxu0 %v981
  %v1141 = vpop.f32.mrb[0].mxu0
  %v1142 = vadd.f32 0.0, %v1141
  %v1143 = vpop.f32.mrb[0].mxu0
  %v1144 = vadd.f32 0.0, %v1143
  %1145 = vdwg.mxu0
  %v1146 = vmul.f32 %v546, %v1059
  %v1147 = vmul.f32 %v547, %v1061
  %v1148 = vmul.f32 %v548, %v1136
  %v1149 = vmul.f32 %v549, %v1138
  %v1150 = vadd.f32 %v1146, %v1065
  %v1151 = vadd.f32 %v1147, %v1067
  %v1152 = vadd.f32 %v1148, %v1142
  %v1153 = vadd.f32 %v1149, %v1144
  %v1154 = vxor.u32 %v1150, 2147483648
  %v1155 = vxor.u32 %v1151, 2147483648
  %v1156 = vxor.u32 %v1152, 2147483648
  %v1157 = vxor.u32 %v1153, 2147483648
  %v1158 = vmul.f32 %v1154, 1.442695
  %v1159 = vpow.pop %v1158
  %v1160 = vmul.f32 %v1155, 1.442695
  %v1161 = vpow.pop %v1160
  %v1162 = vmul.f32 %v1156, 1.442695
  %v1163 = vpow.pop %v1162
  %v1164 = vmul.f32 %v1157, 1.442695
  %v1165 = vpow.pop %v1164
  %v1166 = vadd.f32 %v1159, 1.0
  %v1167 = vadd.f32 %v1161, 1.0
  %v1168 = vadd.f32 %v1163, 1.0
  %v1169 = vadd.f32 %v1165, 1.0
  %v1170 = vrcp.pop %v1166
  %v1171 = vmul.f32 1.0, %v1170
  %v1172 = vrcp.pop %v1167
  %v1173 = vmul.f32 1.0, %v1172
  %v1174 = vrcp.pop %v1168
  %v1175 = vmul.f32 1.0, %v1174
  %v1176 = vrcp.pop %v1169
  %v1177 = vmul.f32 1.0, %v1176
  %v1178 = vmul.f32 %v1150, %v1171
  %v1179 = vmul.f32 %v1151, %v1173
  %v1180 = vmul.f32 %v1152, %v1175
  %v1181 = vmul.f32 %v1153, %v1177
  %1182 = vrot.lane.b32.xlu0 %v1178, 17
  %v1183 = vpop.permute.xlu0 %1182
  %1184 = vrot.lane.b32.xlu0 %v1179, 17
  %v1185 = vpop.permute.xlu0 %1184
  %1186 = vrot.lane.b32.xlu0 %v1180, 17
  %v1187 = vpop.permute.xlu0 %1186
  %1188 = vrot.lane.b32.xlu0 %v1181, 17
  %v1189 = vpop.permute.xlu0 %1188
  %v1190 = vsel %vm122, %v1187, %v1189
  %v1191 = vsel %vm122, %v1185, %v1187
  %v1192 = vsel %vm122, %v1183, %v1185
  %v1193 = vsel %vm122, %v1189, %v1183
  %v1194 = vmul.f32 %v1193, %v130
  %v1195 = vmul.f32 %v1192, %v134
  %v1196 = vmul.f32 %v1191, %v138
  %v1197 = vmul.f32 %v1190, %v142
  %1198 = vrot.lane.b32.xlu0 %v1178, 16
  %v1199 = vpop.permute.xlu0 %1198
  %1200 = vrot.lane.b32.xlu0 %v1179, 16
  %v1201 = vpop.permute.xlu0 %1200
  %1202 = vrot.lane.b32.xlu0 %v1180, 16
  %v1203 = vpop.permute.xlu0 %1202
  %1204 = vrot.lane.b32.xlu0 %v1181, 16
  %v1205 = vpop.permute.xlu0 %1204
  %v1206 = vsel %vm155, %v1203, %v1205
  %v1207 = vsel %vm155, %v1201, %v1203
  %v1208 = vsel %vm155, %v1199, %v1201
  %v1209 = vsel %vm155, %v1205, %v1199
  %v1210 = vmul.f32 %v1209, %v163
  %v1211 = vmul.f32 %v1208, %v167
  %v1212 = vmul.f32 %v1207, %v171
  %v1213 = vmul.f32 %v1206, %v175
  %1214 = vrot.lane.b32.xlu0 %v1178, 15
  %v1215 = vpop.permute.xlu0 %1214
  %1216 = vrot.lane.b32.xlu0 %v1179, 15
  %v1217 = vpop.permute.xlu0 %1216
  %1218 = vrot.lane.b32.xlu0 %v1180, 15
  %v1219 = vpop.permute.xlu0 %1218
  %1220 = vrot.lane.b32.xlu0 %v1181, 15
  %v1221 = vpop.permute.xlu0 %1220
  %v1222 = vsel %vm188, %v1219, %v1221
  %v1223 = vsel %vm188, %v1217, %v1219
  %v1224 = vsel %vm188, %v1215, %v1217
  %v1225 = vsel %vm188, %v1221, %v1215
  %v1226 = vmul.f32 %v1225, %v196
  %v1227 = vmul.f32 %v1224, %v200
  %v1228 = vmul.f32 %v1223, %v204
  %v1229 = vmul.f32 %v1222, %v208
  %1230 = vrot.lane.b32.xlu0 %v1178, 1
  %v1231 = vpop.permute.xlu0 %1230
  %1232 = vrot.lane.b32.xlu0 %v1179, 1
  %v1233 = vpop.permute.xlu0 %1232
  %1234 = vrot.lane.b32.xlu0 %v1180, 1
  %v1235 = vpop.permute.xlu0 %1234
  %1236 = vrot.lane.b32.xlu0 %v1181, 1
  %v1237 = vpop.permute.xlu0 %1236
  %v1238 = vsel %vm221, %v1235, %v1237
  %v1239 = vsel %vm221, %v1233, %v1235
  %v1240 = vsel %vm221, %v1231, %v1233
  %v1241 = vsel %vm221, %v1237, %v1231
  %v1242 = vmul.f32 %v1241, %v229
  %v1243 = vmul.f32 %v1240, %v233
  %v1244 = vmul.f32 %v1239, %v237
  %v1245 = vmul.f32 %v1238, %v241
  %1246 = vrot.lane.b32.xlu0 %v1178, 127
  %v1247 = vpop.permute.xlu0 %1246
  %1248 = vrot.lane.b32.xlu0 %v1179, 127
  %v1249 = vpop.permute.xlu0 %1248
  %1250 = vrot.lane.b32.xlu0 %v1180, 127
  %v1251 = vpop.permute.xlu0 %1250
  %1252 = vrot.lane.b32.xlu0 %v1181, 127
  %v1253 = vpop.permute.xlu0 %1252
  %v1254 = vsel %vm254, %v1251, %v1253
  %v1255 = vsel %vm254, %v1249, %v1251
  %v1256 = vsel %vm254, %v1247, %v1249
  %v1257 = vsel %vm254, %v1253, %v1247
  %v1258 = vmul.f32 %v1256, %v262
  %v1259 = vmul.f32 %v1255, %v266
  %v1260 = vmul.f32 %v1254, %v270
  %v1261 = vmul.f32 %v1257, %v274
  %1262 = vrot.lane.b32.xlu0 %v1178, 113
  %v1263 = vpop.permute.xlu0 %1262
  %1264 = vrot.lane.b32.xlu0 %v1179, 113
  %v1265 = vpop.permute.xlu0 %1264
  %1266 = vrot.lane.b32.xlu0 %v1180, 113
  %v1267 = vpop.permute.xlu0 %1266
  %1268 = vrot.lane.b32.xlu0 %v1181, 113
  %v1269 = vpop.permute.xlu0 %1268
  %v1270 = vsel %vm287, %v1267, %v1269
  %v1271 = vsel %vm287, %v1265, %v1267
  %v1272 = vsel %vm287, %v1263, %v1265
  %v1273 = vsel %vm287, %v1269, %v1263
  %v1274 = vmul.f32 %v1272, %v295
  %v1275 = vmul.f32 %v1271, %v299
  %v1276 = vmul.f32 %v1270, %v303
  %v1277 = vmul.f32 %v1273, %v307
  %1278 = vrot.lane.b32.xlu0 %v1178, 112
  %v1279 = vpop.permute.xlu0 %1278
  %1280 = vrot.lane.b32.xlu0 %v1179, 112
  %v1281 = vpop.permute.xlu0 %1280
  %1282 = vrot.lane.b32.xlu0 %v1180, 112
  %v1283 = vpop.permute.xlu0 %1282
  %1284 = vrot.lane.b32.xlu0 %v1181, 112
  %v1285 = vpop.permute.xlu0 %1284
  %v1286 = vsel %vm320, %v1283, %v1285
  %v1287 = vsel %vm320, %v1281, %v1283
  %v1288 = vsel %vm320, %v1279, %v1281
  %v1289 = vsel %vm320, %v1285, %v1279
  %v1290 = vmul.f32 %v1288, %v328
  %v1291 = vmul.f32 %v1287, %v332
  %v1292 = vmul.f32 %v1286, %v336
  %v1293 = vmul.f32 %v1289, %v340
  %1294 = vrot.lane.b32.xlu0 %v1178, 111
  %v1295 = vpop.permute.xlu0 %1294
  %1296 = vrot.lane.b32.xlu0 %v1179, 111
  %v1297 = vpop.permute.xlu0 %1296
  %1298 = vrot.lane.b32.xlu0 %v1180, 111
  %v1299 = vpop.permute.xlu0 %1298
  %1300 = vrot.lane.b32.xlu0 %v1181, 111
  %v1301 = vpop.permute.xlu0 %1300
  %v1302 = vsel %vm353, %v1299, %v1301
  %v1303 = vsel %vm353, %v1297, %v1299
  %v1304 = vsel %vm353, %v1295, %v1297
  %v1305 = vsel %vm353, %v1301, %v1295
  %v1306 = vmul.f32 %v1304, %v361
  %v1307 = vmul.f32 %v1303, %v365
  %v1308 = vmul.f32 %v1302, %v369
  %v1309 = vmul.f32 %v1305, %v373
  %v1310 = vld [vmem:[%s2] sm:$0xff]
  %1311 = vset.pattern.permute.xlu0 3
  %1312 = vperm.xlu0 %1311, %v110
  %v1313 = vpop.permute.xlu0 %1312
  %v1316 = vsel %vm380, %v1310, 0
  %1318 = vmatprep.subr.mxu0 %v1195
  %1319 = vmatpush1.msra.mxu0 %v1194
  %1320 = vmatprep.subr.mxu0 %v1211
  %1321 = vmatpush1.msra.mxu0 %v1210
  %1322 = vmatprep.subr.mxu0 %v1227
  %1323 = vmatpush1.msra.mxu0 %v1226
  %1324 = vmatprep.subr.mxu0 %v1243
  %1325 = vmatpush1.msra.mxu0 %v1242
  %1326 = vmatprep.subr.mxu0 %v1179
  %1327 = vmatpush1.msra.mxu0 %v1178
  %1328 = vmatprep.subr.mxu0 %v1259
  %1329 = vmatpush1.msra.mxu0 %v1258
  %1330 = vmatprep.subr.mxu0 %v1275
  %1331 = vmatpush1.msra.mxu0 %v1274
  %1332 = vmatprep.subr.mxu0 %v1291
  %1333 = vmatpush1.msra.mxu0 %v1290
  %1334 = vmatprep.subr.mxu0 %v1307
  %1335 = vmatpush1.msra.mxu0 %v1306
  %1336 = vmatprep.subr.mxu0 0.0
  %1337 = vmatpush1.msra.mxu0 0.0
  %1338 = vmatprep.subr.mxu0 0.0
  %1339 = vmatpush1.msra.mxu0 0.0
  %1340 = vmatprep.subr.mxu0 0.0
  %1341 = vmatpush1.msra.mxu0 0.0
  %1342 = vmatprep.subr.mxu0 0.0
  %1343 = vmatpush1.msra.mxu0 0.0
  %1344 = vmatprep.subr.mxu0 0.0
  %1345 = vmatpush1.msra.mxu0 0.0
  %1346 = vmatprep.subr.mxu0 0.0
  %1347 = vmatpush1.msra.mxu0 0.0
  %1348 = vmatprep.subr.mxu0 0.0
  %1349 = vmatpush1.msra.mxu0 0.0
  %1350 = vmatprep.subr.mxu0 0.0
  %1351 = vmatpush1.msra.mxu0 0.0
  %1352 = vmatprep.subr.mxu0 0.0
  %1353 = vmatpush1.msra.mxu0 0.0
  %1354 = vmatprep.subr.mxu0 0.0
  %1355 = vmatpush1.msra.mxu0 0.0
  %1356 = vmatprep.subr.mxu0 0.0
  %1357 = vmatpush1.msra.mxu0 0.0
  %1358 = vmatprep.subr.mxu0 0.0
  %1359 = vmatpush1.msra.mxu0 0.0
  %1360 = vmatprep.subr.mxu0 0.0
  %1361 = vmatpush1.msra.mxu0 0.0
  %1362 = vmatprep.subr.mxu0 0.0
  %1363 = vmatpush1.msra.mxu0 0.0
  %1364 = vmatprep.subr.mxu0 0.0
  %1365 = vmatpush1.msra.mxu0 0.0
  %1366 = vmatprep.subr.mxu0 0.0
  %1367 = vmatpush1.msra.mxu0 0.0
  %1368 = vmatprep.subr.mxu0 0.0
  %1369 = vmatpush1.msra.mxu0 0.0
  %1370 = vmatprep.subr.mxu0 0.0
  %1371 = vmatpush1.msra.mxu0 0.0
  %1372 = vmatprep.subr.mxu0 0.0
  %1373 = vmatpush1.msra.mxu0 0.0
  %1374 = vmatprep.subr.mxu0 0.0
  %1375 = vmatpush1.msra.mxu0 0.0
  %1376 = vmatprep.subr.mxu0 0.0
  %1377 = vmatpush1.msra.mxu0 0.0
  %1378 = vmatprep.subr.mxu0 0.0
  %1379 = vmatpush1.msra.mxu0 0.0
  %1380 = vmatprep.subr.mxu0 0.0
  %1381 = vmatpush1.msra.mxu0 0.0
  %1382 = vmatprep.mubr.f32.mxu0 0.0
  %1383 = vmatmul.mubr.f32.gmra.mrb[0].mxu0 %v1316
  %v1384 = vpop.f32.mrb[0].mxu0
  %v1385 = vadd.f32 %v1313, %v1384
  %v1386 = vpop.f32.mrb[0].mxu0
  %v1387 = vadd.f32 %v1313, %v1386
  %1388 = vdwg.mxu0
  %1389 = vmatprep.subr.mxu0 %v1197
  %1390 = vmatpush1.msra.mxu0 %v1196
  %1391 = vmatprep.subr.mxu0 %v1213
  %1392 = vmatpush1.msra.mxu0 %v1212
  %1393 = vmatprep.subr.mxu0 %v1229
  %1394 = vmatpush1.msra.mxu0 %v1228
  %1395 = vmatprep.subr.mxu0 %v1245
  %1396 = vmatpush1.msra.mxu0 %v1244
  %1397 = vmatprep.subr.mxu0 %v1181
  %1398 = vmatpush1.msra.mxu0 %v1180
  %1399 = vmatprep.subr.mxu0 %v1261
  %1400 = vmatpush1.msra.mxu0 %v1260
  %1401 = vmatprep.subr.mxu0 %v1277
  %1402 = vmatpush1.msra.mxu0 %v1276
  %1403 = vmatprep.subr.mxu0 %v1293
  %1404 = vmatpush1.msra.mxu0 %v1292
  %1405 = vmatprep.subr.mxu0 %v1309
  %1406 = vmatpush1.msra.mxu0 %v1308
  %1407 = vmatprep.subr.mxu0 0.0
  %1408 = vmatpush1.msra.mxu0 0.0
  %1409 = vmatprep.subr.mxu0 0.0
  %1410 = vmatpush1.msra.mxu0 0.0
  %1411 = vmatprep.subr.mxu0 0.0
  %1412 = vmatpush1.msra.mxu0 0.0
  %1413 = vmatprep.subr.mxu0 0.0
  %1414 = vmatpush1.msra.mxu0 0.0
  %1415 = vmatprep.subr.mxu0 0.0
  %1416 = vmatpush1.msra.mxu0 0.0
  %1417 = vmatprep.subr.mxu0 0.0
  %1418 = vmatpush1.msra.mxu0 0.0
  %1419 = vmatprep.subr.mxu0 0.0
  %1420 = vmatpush1.msra.mxu0 0.0
  %1421 = vmatprep.subr.mxu0 0.0
  %1422 = vmatpush1.msra.mxu0 0.0
  %1423 = vmatprep.subr.mxu0 0.0
  %1424 = vmatpush1.msra.mxu0 0.0
  %1425 = vmatprep.subr.mxu0 0.0
  %1426 = vmatpush1.msra.mxu0 0.0
  %1427 = vmatprep.subr.mxu0 0.0
  %1428 = vmatpush1.msra.mxu0 0.0
  %1429 = vmatprep.subr.mxu0 0.0
  %1430 = vmatpush1.msra.mxu0 0.0
  %1431 = vmatprep.subr.mxu0 0.0
  %1432 = vmatpush1.msra.mxu0 0.0
  %1433 = vmatprep.subr.mxu0 0.0
  %1434 = vmatpush1.msra.mxu0 0.0
  %1435 = vmatprep.subr.mxu0 0.0
  %1436 = vmatpush1.msra.mxu0 0.0
  %1437 = vmatprep.subr.mxu0 0.0
  %1438 = vmatpush1.msra.mxu0 0.0
  %1439 = vmatprep.subr.mxu0 0.0
  %1440 = vmatpush1.msra.mxu0 0.0
  %1441 = vmatprep.subr.mxu0 0.0
  %1442 = vmatpush1.msra.mxu0 0.0
  %1443 = vmatprep.subr.mxu0 0.0
  %1444 = vmatpush1.msra.mxu0 0.0
  %1445 = vmatprep.subr.mxu0 0.0
  %1446 = vmatpush1.msra.mxu0 0.0
  %1447 = vmatprep.subr.mxu0 0.0
  %1448 = vmatpush1.msra.mxu0 0.0
  %1449 = vmatprep.subr.mxu0 0.0
  %1450 = vmatpush1.msra.mxu0 0.0
  %1451 = vmatprep.subr.mxu0 0.0
  %1452 = vmatpush1.msra.mxu0 0.0
  %1453 = vmatprep.mubr.f32.mxu0 0.0
  %1454 = vmatmul.mubr.f32.gmra.mrb[0].mxu0 %v1316
  %v1455 = vpop.f32.mrb[0].mxu0
  %v1456 = vadd.f32 %v1313, %v1455
  %v1457 = vpop.f32.mrb[0].mxu0
  %v1458 = vadd.f32 %v1313, %v1457
  %1459 = vdwg.mxu0
  %1460 = vmatprep.subr.mxu0 0.0
  %1461 = vmatpush1.msra.mxu0 %v45
  %1462 = vmatprep.subr.mxu0 0.0
  %1463 = vmatpush1.msra.mxu0 %v46
  %1464 = vmatprep.subr.mxu0 0.0
  %1465 = vmatpush1.msra.mxu0 %v47
  %1466 = vmatprep.subr.mxu0 0.0
  %1467 = vmatpush1.msra.mxu0 %v48
  %1468 = vmatprep.subr.mxu0 0.0
  %1469 = vmatpush1.msra.mxu0 %v49
  %1470 = vmatprep.subr.mxu0 0.0
  %1471 = vmatpush1.msra.mxu0 %v50
  %1472 = vmatprep.subr.mxu0 0.0
  %1473 = vmatpush1.msra.mxu0 %v51
  %1474 = vmatprep.subr.mxu0 0.0
  %1475 = vmatpush1.msra.mxu0 %v52
  %1476 = vmatprep.subr.mxu0 0.0
  %1477 = vmatpush1.msra.mxu0 %v53
  %1478 = vmatprep.subr.mxu0 0.0
  %1479 = vmatpush1.msra.mxu0 %v54
  %1480 = vmatprep.subr.mxu0 0.0
  %1481 = vmatpush1.msra.mxu0 %v55
  %1482 = vmatprep.subr.mxu0 0.0
  %1483 = vmatpush1.msra.mxu0 %v56
  %1484 = vmatprep.subr.mxu0 0.0
  %1485 = vmatpush1.msra.mxu0 %v57
  %1486 = vmatprep.subr.mxu0 0.0
  %1487 = vmatpush1.msra.mxu0 %v58
  %1488 = vmatprep.subr.mxu0 0.0
  %1489 = vmatpush1.msra.mxu0 %v59
  %1490 = vmatprep.subr.mxu0 0.0
  %1491 = vmatpush1.msra.mxu0 %v60
  %1492 = vmatprep.subr.mxu0 0.0
  %1493 = vmatpush1.msra.mxu0 %v61
  %1494 = vmatprep.subr.mxu0 0.0
  %1495 = vmatpush1.msra.mxu0 %v62
  %1496 = vmatprep.subr.mxu0 0.0
  %1497 = vmatpush1.msra.mxu0 %v63
  %1498 = vmatprep.subr.mxu0 0.0
  %1499 = vmatpush1.msra.mxu0 %v64
  %1500 = vmatprep.subr.mxu0 0.0
  %1501 = vmatpush1.msra.mxu0 %v65
  %1502 = vmatprep.subr.mxu0 0.0
  %1503 = vmatpush1.msra.mxu0 %v66
  %1504 = vmatprep.subr.mxu0 0.0
  %1505 = vmatpush1.msra.mxu0 %v67
  %1506 = vmatprep.subr.mxu0 0.0
  %1507 = vmatpush1.msra.mxu0 %v68
  %1508 = vmatprep.subr.mxu0 0.0
  %1509 = vmatpush1.msra.mxu0 %v69
  %1510 = vmatprep.subr.mxu0 0.0
  %1511 = vmatpush1.msra.mxu0 %v70
  %1512 = vmatprep.subr.mxu0 0.0
  %1513 = vmatpush1.msra.mxu0 %v71
  %1514 = vmatprep.subr.mxu0 0.0
  %1515 = vmatpush1.msra.mxu0 %v72
  %1516 = vmatprep.subr.mxu0 0.0
  %1517 = vmatpush1.msra.mxu0 %v73
  %1518 = vmatprep.subr.mxu0 0.0
  %1519 = vmatpush1.msra.mxu0 %v74
  %1520 = vmatprep.subr.mxu0 0.0
  %1521 = vmatpush1.msra.mxu0 %v75
  %1522 = vmatprep.subr.mxu0 0.0
  %1523 = vmatpush1.msra.mxu0 %v76
  %1524 = vmatprep.mubr.f32.mxu0 %v1387
  %1525 = vmatmul.mubr.f32.gmra.mrb[0].mxu0 %v1385
  %v1526 = vpop.f32.mrb[0].mxu0
  %v1527 = vadd.f32 0.0, %v1526
  %v1528 = vpop.f32.mrb[0].mxu0
  %1529 = vdwg.mxu0
  %1530 = vmatprep.subr.mxu0 0.0
  %1531 = vmatpush1.msra.mxu0 %v77
  %1532 = vmatprep.subr.mxu0 0.0
  %1533 = vmatpush1.msra.mxu0 %v78
  %1534 = vmatprep.subr.mxu0 0.0
  %1535 = vmatpush1.msra.mxu0 %v79
  %1536 = vmatprep.subr.mxu0 0.0
  %1537 = vmatpush1.msra.mxu0 %v80
  %1538 = vmatprep.subr.mxu0 0.0
  %1539 = vmatpush1.msra.mxu0 %v81
  %1540 = vmatprep.subr.mxu0 0.0
  %1541 = vmatpush1.msra.mxu0 %v82
  %1542 = vmatprep.subr.mxu0 0.0
  %1543 = vmatpush1.msra.mxu0 %v83
  %1544 = vmatprep.subr.mxu0 0.0
  %1545 = vmatpush1.msra.mxu0 %v84
  %1546 = vmatprep.subr.mxu0 0.0
  %1547 = vmatpush1.msra.mxu0 %v85
  %1548 = vmatprep.subr.mxu0 0.0
  %1549 = vmatpush1.msra.mxu0 %v86
  %1550 = vmatprep.subr.mxu0 0.0
  %1551 = vmatpush1.msra.mxu0 %v87
  %1552 = vmatprep.subr.mxu0 0.0
  %1553 = vmatpush1.msra.mxu0 %v88
  %1554 = vmatprep.subr.mxu0 0.0
  %1555 = vmatpush1.msra.mxu0 %v89
  %1556 = vmatprep.subr.mxu0 0.0
  %1557 = vmatpush1.msra.mxu0 %v90
  %1558 = vmatprep.subr.mxu0 0.0
  %1559 = vmatpush1.msra.mxu0 %v91
  %1560 = vmatprep.subr.mxu0 0.0
  %1561 = vmatpush1.msra.mxu0 %v92
  %1562 = vmatprep.subr.mxu0 0.0
  %1563 = vmatpush1.msra.mxu0 %v93
  %1564 = vmatprep.subr.mxu0 0.0
  %1565 = vmatpush1.msra.mxu0 %v94
  %1566 = vmatprep.subr.mxu0 0.0
  %1567 = vmatpush1.msra.mxu0 %v95
  %1568 = vmatprep.subr.mxu0 0.0
  %1569 = vmatpush1.msra.mxu0 %v96
  %1570 = vmatprep.subr.mxu0 0.0
  %1571 = vmatpush1.msra.mxu0 %v97
  %1572 = vmatprep.subr.mxu0 0.0
  %1573 = vmatpush1.msra.mxu0 %v98
  %1574 = vmatprep.subr.mxu0 0.0
  %1575 = vmatpush1.msra.mxu0 %v99
  %1576 = vmatprep.subr.mxu0 0.0
  %1577 = vmatpush1.msra.mxu0 %v100
  %1578 = vmatprep.subr.mxu0 0.0
  %1579 = vmatpush1.msra.mxu0 %v101
  %1580 = vmatprep.subr.mxu0 0.0
  %1581 = vmatpush1.msra.mxu0 %v102
  %1582 = vmatprep.subr.mxu0 0.0
  %1583 = vmatpush1.msra.mxu0 %v103
  %1584 = vmatprep.subr.mxu0 0.0
  %1585 = vmatpush1.msra.mxu0 %v104
  %1586 = vmatprep.subr.mxu0 0.0
  %1587 = vmatpush1.msra.mxu0 %v105
  %1588 = vmatprep.subr.mxu0 0.0
  %1589 = vmatpush1.msra.mxu0 %v106
  %1590 = vmatprep.subr.mxu0 0.0
  %1591 = vmatpush1.msra.mxu0 %v107
  %1592 = vmatprep.subr.mxu0 0.0
  %1593 = vmatpush1.msra.mxu0 %v108
  %1594 = vmatprep.mubr.f32.mxu0 %v1458
  %1595 = vmatmul.mubr.f32.gmra.mrb[0].mxu0 %v1456
  %v1596 = vpop.f32.mrb[0].mxu0
  %v1597 = vadd.f32 %v1527, %v1596
  %v1598 = vpop.f32.mrb[0].mxu0
  %1599 = vdwg.mxu0
  %v1600 = vmul.f32 %v1385, %v1385
  %v1601 = vmul.f32 %v1387, %v1387
  %v1602 = vmul.f32 %v1456, %v1456
  %v1603 = vmul.f32 %v1458, %v1458
  %1604 = vmatprep.subr.mxu0 0.0
  %1605 = vmatpush1.msra.mxu0 %v45
  %1606 = vmatprep.subr.mxu0 0.0
  %1607 = vmatpush1.msra.mxu0 %v46
  %1608 = vmatprep.subr.mxu0 0.0
  %1609 = vmatpush1.msra.mxu0 %v47
  %1610 = vmatprep.subr.mxu0 0.0
  %1611 = vmatpush1.msra.mxu0 %v48
  %1612 = vmatprep.subr.mxu0 0.0
  %1613 = vmatpush1.msra.mxu0 %v49
  %1614 = vmatprep.subr.mxu0 0.0
  %1615 = vmatpush1.msra.mxu0 %v50
  %1616 = vmatprep.subr.mxu0 0.0
  %1617 = vmatpush1.msra.mxu0 %v51
  %1618 = vmatprep.subr.mxu0 0.0
  %1619 = vmatpush1.msra.mxu0 %v52
  %1620 = vmatprep.subr.mxu0 0.0
  %1621 = vmatpush1.msra.mxu0 %v53
  %1622 = vmatprep.subr.mxu0 0.0
  %1623 = vmatpush1.msra.mxu0 %v54
  %1624 = vmatprep.subr.mxu0 0.0
  %1625 = vmatpush1.msra.mxu0 %v55
  %1626 = vmatprep.subr.mxu0 0.0
  %1627 = vmatpush1.msra.mxu0 %v56
  %1628 = vmatprep.subr.mxu0 0.0
  %1629 = vmatpush1.msra.mxu0 %v57
  %1630 = vmatprep.subr.mxu0 0.0
  %1631 = vmatpush1.msra.mxu0 %v58
  %1632 = vmatprep.subr.mxu0 0.0
  %1633 = vmatpush1.msra.mxu0 %v59
  %1634 = vmatprep.subr.mxu0 0.0
  %1635 = vmatpush1.msra.mxu0 %v60
  %1636 = vmatprep.subr.mxu0 0.0
  %1637 = vmatpush1.msra.mxu0 %v61
  %1638 = vmatprep.subr.mxu0 0.0
  %1639 = vmatpush1.msra.mxu0 %v62
  %1640 = vmatprep.subr.mxu0 0.0
  %1641 = vmatpush1.msra.mxu0 %v63
  %1642 = vmatprep.subr.mxu0 0.0
  %1643 = vmatpush1.msra.mxu0 %v64
  %1644 = vmatprep.subr.mxu0 0.0
  %1645 = vmatpush1.msra.mxu0 %v65
  %1646 = vmatprep.subr.mxu0 0.0
  %1647 = vmatpush1.msra.mxu0 %v66
  %1648 = vmatprep.subr.mxu0 0.0
  %1649 = vmatpush1.msra.mxu0 %v67
  %1650 = vmatprep.subr.mxu0 0.0
  %1651 = vmatpush1.msra.mxu0 %v68
  %1652 = vmatprep.subr.mxu0 0.0
  %1653 = vmatpush1.msra.mxu0 %v69
  %1654 = vmatprep.subr.mxu0 0.0
  %1655 = vmatpush1.msra.mxu0 %v70
  %1656 = vmatprep.subr.mxu0 0.0
  %1657 = vmatpush1.msra.mxu0 %v71
  %1658 = vmatprep.subr.mxu0 0.0
  %1659 = vmatpush1.msra.mxu0 %v72
  %1660 = vmatprep.subr.mxu0 0.0
  %1661 = vmatpush1.msra.mxu0 %v73
  %1662 = vmatprep.subr.mxu0 0.0
  %1663 = vmatpush1.msra.mxu0 %v74
  %1664 = vmatprep.subr.mxu0 0.0
  %1665 = vmatpush1.msra.mxu0 %v75
  %1666 = vmatprep.subr.mxu0 0.0
  %1667 = vmatpush1.msra.mxu0 %v76
  %1668 = vmatprep.mubr.f32.mxu0 %v1601
  %1669 = vmatmul.mubr.f32.gmra.mrb[0].mxu0 %v1600
  %v1670 = vpop.f32.mrb[0].mxu0
  %v1671 = vadd.f32 0.0, %v1670
  %v1672 = vpop.f32.mrb[0].mxu0
  %1673 = vdwg.mxu0
  %1674 = vmatprep.subr.mxu0 0.0
  %1675 = vmatpush1.msra.mxu0 %v77
  %1676 = vmatprep.subr.mxu0 0.0
  %1677 = vmatpush1.msra.mxu0 %v78
  %1678 = vmatprep.subr.mxu0 0.0
  %1679 = vmatpush1.msra.mxu0 %v79
  %1680 = vmatprep.subr.mxu0 0.0
  %1681 = vmatpush1.msra.mxu0 %v80
  %1682 = vmatprep.subr.mxu0 0.0
  %1683 = vmatpush1.msra.mxu0 %v81
  %1684 = vmatprep.subr.mxu0 0.0
  %1685 = vmatpush1.msra.mxu0 %v82
  %1686 = vmatprep.subr.mxu0 0.0
  %1687 = vmatpush1.msra.mxu0 %v83
  %1688 = vmatprep.subr.mxu0 0.0
  %1689 = vmatpush1.msra.mxu0 %v84
  %1690 = vmatprep.subr.mxu0 0.0
  %1691 = vmatpush1.msra.mxu0 %v85
  %1692 = vmatprep.subr.mxu0 0.0
  %1693 = vmatpush1.msra.mxu0 %v86
  %1694 = vmatprep.subr.mxu0 0.0
  %1695 = vmatpush1.msra.mxu0 %v87
  %1696 = vmatprep.subr.mxu0 0.0
  %1697 = vmatpush1.msra.mxu0 %v88
  %1698 = vmatprep.subr.mxu0 0.0
  %1699 = vmatpush1.msra.mxu0 %v89
  %1700 = vmatprep.subr.mxu0 0.0
  %1701 = vmatpush1.msra.mxu0 %v90
  %1702 = vmatprep.subr.mxu0 0.0
  %1703 = vmatpush1.msra.mxu0 %v91
  %1704 = vmatprep.subr.mxu0 0.0
  %1705 = vmatpush1.msra.mxu0 %v92
  %1706 = vmatprep.subr.mxu0 0.0
  %1707 = vmatpush1.msra.mxu0 %v93
  %1708 = vmatprep.subr.mxu0 0.0
  %1709 = vmatpush1.msra.mxu0 %v94
  %1710 = vmatprep.subr.mxu0 0.0
  %1711 = vmatpush1.msra.mxu0 %v95
  %1712 = vmatprep.subr.mxu0 0.0
  %1713 = vmatpush1.msra.mxu0 %v96
  %1714 = vmatprep.subr.mxu0 0.0
  %1715 = vmatpush1.msra.mxu0 %v97
  %1716 = vmatprep.subr.mxu0 0.0
  %1717 = vmatpush1.msra.mxu0 %v98
  %1718 = vmatprep.subr.mxu0 0.0
  %1719 = vmatpush1.msra.mxu0 %v99
  %1720 = vmatprep.subr.mxu0 0.0
  %1721 = vmatpush1.msra.mxu0 %v100
  %1722 = vmatprep.subr.mxu0 0.0
  %1723 = vmatpush1.msra.mxu0 %v101
  %1724 = vmatprep.subr.mxu0 0.0
  %1725 = vmatpush1.msra.mxu0 %v102
  %1726 = vmatprep.subr.mxu0 0.0
  %1727 = vmatpush1.msra.mxu0 %v103
  %1728 = vmatprep.subr.mxu0 0.0
  %1729 = vmatpush1.msra.mxu0 %v104
  %1730 = vmatprep.subr.mxu0 0.0
  %1731 = vmatpush1.msra.mxu0 %v105
  %1732 = vmatprep.subr.mxu0 0.0
  %1733 = vmatpush1.msra.mxu0 %v106
  %1734 = vmatprep.subr.mxu0 0.0
  %1735 = vmatpush1.msra.mxu0 %v107
  %1736 = vmatprep.subr.mxu0 0.0
  %1737 = vmatpush1.msra.mxu0 %v108
  %1738 = vmatprep.mubr.f32.mxu0 %v1603
  %1739 = vmatmul.mubr.f32.gmra.mrb[0].mxu0 %v1602
  %v1740 = vpop.f32.mrb[0].mxu0
  %v1741 = vadd.f32 %v1671, %v1740
  %v1742 = vpop.f32.mrb[0].mxu0
  %1743 = vdwg.mxu0
  %1745 = vrot.lane.b32.xlu0 %v1741, 2
  %v1746 = vpop.permute.xlu0 %1745
  %v1748 = vsel %vm846, %v1597, %v1746
  %1749 = vmatprep.subr.mxu0 0.0
  %1750 = vmatpush1.msra.mxu0 %v1748
  %1751 = vmatprep.subr.mxu0 0.0
  %1752 = vmatpush1.msra.mxu0 0.0
  %1753 = vmatprep.subr.mxu0 0.0
  %1754 = vmatpush1.msra.mxu0 0.0
  %1755 = vmatprep.subr.mxu0 0.0
  %1756 = vmatpush1.msra.mxu0 0.0
  %1757 = vmatprep.subr.mxu0 0.0
  %1758 = vmatpush1.msra.mxu0 0.0
  %1759 = vmatprep.subr.mxu0 0.0
  %1760 = vmatpush1.msra.mxu0 0.0
  %1761 = vmatprep.subr.mxu0 0.0
  %1762 = vmatpush1.msra.mxu0 0.0
  %1763 = vmatprep.subr.mxu0 0.0
  %1764 = vmatpush1.msra.mxu0 0.0
  %1765 = vmatprep.subr.mxu0 0.0
  %1766 = vmatpush1.msra.mxu0 0.0
  %1767 = vmatprep.subr.mxu0 0.0
  %1768 = vmatpush1.msra.mxu0 0.0
  %1769 = vmatprep.subr.mxu0 0.0
  %1770 = vmatpush1.msra.mxu0 0.0
  %1771 = vmatprep.subr.mxu0 0.0
  %1772 = vmatpush1.msra.mxu0 0.0
  %1773 = vmatprep.subr.mxu0 0.0
  %1774 = vmatpush1.msra.mxu0 0.0
  %1775 = vmatprep.subr.mxu0 0.0
  %1776 = vmatpush1.msra.mxu0 0.0
  %1777 = vmatprep.subr.mxu0 0.0
  %1778 = vmatpush1.msra.mxu0 0.0
  %1779 = vmatprep.subr.mxu0 0.0
  %1780 = vmatpush1.msra.mxu0 0.0
  %1781 = vmatprep.subr.mxu0 0.0
  %1782 = vmatpush1.msra.mxu0 0.0
  %1783 = vmatprep.subr.mxu0 0.0
  %1784 = vmatpush1.msra.mxu0 0.0
  %1785 = vmatprep.subr.mxu0 0.0
  %1786 = vmatpush1.msra.mxu0 0.0
  %1787 = vmatprep.subr.mxu0 0.0
  %1788 = vmatpush1.msra.mxu0 0.0
  %1789 = vmatprep.subr.mxu0 0.0
  %1790 = vmatpush1.msra.mxu0 0.0
  %1791 = vmatprep.subr.mxu0 0.0
  %1792 = vmatpush1.msra.mxu0 0.0
  %1793 = vmatprep.subr.mxu0 0.0
  %1794 = vmatpush1.msra.mxu0 0.0
  %1795 = vmatprep.subr.mxu0 0.0
  %1796 = vmatpush1.msra.mxu0 0.0
  %1797 = vmatprep.subr.mxu0 0.0
  %1798 = vmatpush1.msra.mxu0 0.0
  %1799 = vmatprep.subr.mxu0 0.0
  %1800 = vmatpush1.msra.mxu0 0.0
  %1801 = vmatprep.subr.mxu0 0.0
  %1802 = vmatpush1.msra.mxu0 0.0
  %1803 = vmatprep.subr.mxu0 0.0
  %1804 = vmatpush1.msra.mxu0 0.0
  %1805 = vmatprep.subr.mxu0 0.0
  %1806 = vmatpush1.msra.mxu0 0.0
  %1807 = vmatprep.subr.mxu0 0.0
  %1808 = vmatpush1.msra.mxu0 0.0
  %1809 = vmatprep.subr.mxu0 0.0
  %1810 = vmatpush1.msra.mxu0 0.0
  %1811 = vmatprep.subr.mxu0 0.0
  %1812 = vmatpush1.msra.mxu0 0.0
  %1813 = vmatprep.mubr.f32.mxu0 0.0
  %1814 = vmatmul.mubr.f32.gmra.mrb[0].mxu0 %v850
  %v1815 = vpop.f32.mrb[0].mxu0
  %v1816 = vadd.f32 0.0, %v1815
  %v1817 = vpop.f32.mrb[0].mxu0
  %1818 = vdwg.mxu0
  %v1819 = vmul.f32 %v1816, %v1816
  %1821 = vrot.lane.b32.xlu0 %v1819, 2
  %v1822 = vpop.permute.xlu0 %1821
  %v1824 = vsub.f32 %v1816, %v1822
  %v1825 = vmax.f32 %v1824, 0.0
  %v1826 = vadd.f32 %v1825, 1e-05
  %v1827 = vrsqrt.pop %v1826
  %1828 = vset.pattern.permute.xlu0 4
  %1829 = vperm.xlu0 %1828, %v110
  %v1830 = vpop.permute.xlu0 %1829
  %v1832 = vmul.f32 %v1827, %v1830
  %1833 = vset.pattern.permute.xlu0 5
  %1834 = vperm.xlu0 %1833, %v110
  %v1835 = vpop.permute.xlu0 %1834
  %1838 = vrot.lane.b32.xlu0 %v1832, 126
  %v1839 = vpop.permute.xlu0 %1838
  %v1841 = vmul.f32 %v1816, %v1839
  %v1842 = vsub.f32 %v1835, %v1841
  %1844 = vrot.lane.b32.xlu0 %v1842, 2
  %v1845 = vpop.permute.xlu0 %1844
  %1846 = vrot.lane.b32.xlu0 %v1845, 126
  %v1847 = vpop.permute.xlu0 %1846
  %v1848 = vsel %vm846, %v1839, 0
  %v1850 = vsel %vm846, %v1847, 0
  %1852 = vmatprep.subr.mxu0 %v986
  %1853 = vmatpush1.msra.mxu0 %v984
  %1854 = vmatprep.subr.mxu0 0.0
  %1855 = vmatpush1.msra.mxu0 0.0
  %1856 = vmatprep.subr.mxu0 0.0
  %1857 = vmatpush1.msra.mxu0 0.0
  %1858 = vmatprep.subr.mxu0 0.0
  %1859 = vmatpush1.msra.mxu0 0.0
  %1860 = vmatprep.subr.mxu0 0.0
  %1861 = vmatpush1.msra.mxu0 0.0
  %1862 = vmatprep.subr.mxu0 0.0
  %1863 = vmatpush1.msra.mxu0 0.0
  %1864 = vmatprep.subr.mxu0 0.0
  %1865 = vmatpush1.msra.mxu0 0.0
  %1866 = vmatprep.subr.mxu0 0.0
  %1867 = vmatpush1.msra.mxu0 0.0
  %1868 = vmatprep.subr.mxu0 0.0
  %1869 = vmatpush1.msra.mxu0 0.0
  %1870 = vmatprep.subr.mxu0 0.0
  %1871 = vmatpush1.msra.mxu0 0.0
  %1872 = vmatprep.subr.mxu0 0.0
  %1873 = vmatpush1.msra.mxu0 0.0
  %1874 = vmatprep.subr.mxu0 0.0
  %1875 = vmatpush1.msra.mxu0 0.0
  %1876 = vmatprep.subr.mxu0 0.0
  %1877 = vmatpush1.msra.mxu0 0.0
  %1878 = vmatprep.subr.mxu0 0.0
  %1879 = vmatpush1.msra.mxu0 0.0
  %1880 = vmatprep.subr.mxu0 0.0
  %1881 = vmatpush1.msra.mxu0 0.0
  %1882 = vmatprep.subr.mxu0 0.0
  %1883 = vmatpush1.msra.mxu0 0.0
  %1884 = vmatprep.subr.mxu0 0.0
  %1885 = vmatpush1.msra.mxu0 0.0
  %1886 = vmatprep.subr.mxu0 0.0
  %1887 = vmatpush1.msra.mxu0 0.0
  %1888 = vmatprep.subr.mxu0 0.0
  %1889 = vmatpush1.msra.mxu0 0.0
  %1890 = vmatprep.subr.mxu0 0.0
  %1891 = vmatpush1.msra.mxu0 0.0
  %1892 = vmatprep.subr.mxu0 0.0
  %1893 = vmatpush1.msra.mxu0 0.0
  %1894 = vmatprep.subr.mxu0 0.0
  %1895 = vmatpush1.msra.mxu0 0.0
  %1896 = vmatprep.subr.mxu0 0.0
  %1897 = vmatpush1.msra.mxu0 0.0
  %1898 = vmatprep.subr.mxu0 0.0
  %1899 = vmatpush1.msra.mxu0 0.0
  %1900 = vmatprep.subr.mxu0 0.0
  %1901 = vmatpush1.msra.mxu0 0.0
  %1902 = vmatprep.subr.mxu0 0.0
  %1903 = vmatpush1.msra.mxu0 0.0
  %1904 = vmatprep.subr.mxu0 0.0
  %1905 = vmatpush1.msra.mxu0 0.0
  %1906 = vmatprep.subr.mxu0 0.0
  %1907 = vmatpush1.msra.mxu0 0.0
  %1908 = vmatprep.subr.mxu0 0.0
  %1909 = vmatpush1.msra.mxu0 0.0
  %1910 = vmatprep.subr.mxu0 0.0
  %1911 = vmatpush1.msra.mxu0 0.0
  %1912 = vmatprep.subr.mxu0 0.0
  %1913 = vmatpush1.msra.mxu0 0.0
  %1914 = vmatprep.subr.mxu0 0.0
  %1915 = vmatpush1.msra.mxu0 0.0
  %1916 = vmatprep.mubr.f32.mxu0 0.0
  %1917 = vmatmul.mubr.f32.gmra.mrb[0].mxu0 %v1848
  %v1918 = vpop.f32.mrb[0].mxu0
  %v1919 = vadd.f32 0.0, %v1918
  %v1920 = vpop.f32.mrb[0].mxu0
  %v1921 = vadd.f32 0.0, %v1920
  %1922 = vmatprep.mubr.f32.mxu0 0.0
  %1923 = vmatmul.mubr.f32.gmra.mrb[0].mxu0 %v1850
  %v1924 = vpop.f32.mrb[0].mxu0
  %v1925 = vadd.f32 0.0, %v1924
  %v1926 = vpop.f32.mrb[0].mxu0
  %v1927 = vadd.f32 0.0, %v1926
  %1928 = vdwg.mxu0
  %1929 = vmatprep.subr.mxu0 %v990
  %1930 = vmatpush1.msra.mxu0 %v988
  %1931 = vmatprep.subr.mxu0 0.0
  %1932 = vmatpush1.msra.mxu0 0.0
  %1933 = vmatprep.subr.mxu0 0.0
  %1934 = vmatpush1.msra.mxu0 0.0
  %1935 = vmatprep.subr.mxu0 0.0
  %1936 = vmatpush1.msra.mxu0 0.0
  %1937 = vmatprep.subr.mxu0 0.0
  %1938 = vmatpush1.msra.mxu0 0.0
  %1939 = vmatprep.subr.mxu0 0.0
  %1940 = vmatpush1.msra.mxu0 0.0
  %1941 = vmatprep.subr.mxu0 0.0
  %1942 = vmatpush1.msra.mxu0 0.0
  %1943 = vmatprep.subr.mxu0 0.0
  %1944 = vmatpush1.msra.mxu0 0.0
  %1945 = vmatprep.subr.mxu0 0.0
  %1946 = vmatpush1.msra.mxu0 0.0
  %1947 = vmatprep.subr.mxu0 0.0
  %1948 = vmatpush1.msra.mxu0 0.0
  %1949 = vmatprep.subr.mxu0 0.0
  %1950 = vmatpush1.msra.mxu0 0.0
  %1951 = vmatprep.subr.mxu0 0.0
  %1952 = vmatpush1.msra.mxu0 0.0
  %1953 = vmatprep.subr.mxu0 0.0
  %1954 = vmatpush1.msra.mxu0 0.0
  %1955 = vmatprep.subr.mxu0 0.0
  %1956 = vmatpush1.msra.mxu0 0.0
  %1957 = vmatprep.subr.mxu0 0.0
  %1958 = vmatpush1.msra.mxu0 0.0
  %1959 = vmatprep.subr.mxu0 0.0
  %1960 = vmatpush1.msra.mxu0 0.0
  %1961 = vmatprep.subr.mxu0 0.0
  %1962 = vmatpush1.msra.mxu0 0.0
  %1963 = vmatprep.subr.mxu0 0.0
  %1964 = vmatpush1.msra.mxu0 0.0
  %1965 = vmatprep.subr.mxu0 0.0
  %1966 = vmatpush1.msra.mxu0 0.0
  %1967 = vmatprep.subr.mxu0 0.0
  %1968 = vmatpush1.msra.mxu0 0.0
  %1969 = vmatprep.subr.mxu0 0.0
  %1970 = vmatpush1.msra.mxu0 0.0
  %1971 = vmatprep.subr.mxu0 0.0
  %1972 = vmatpush1.msra.mxu0 0.0
  %1973 = vmatprep.subr.mxu0 0.0
  %1974 = vmatpush1.msra.mxu0 0.0
  %1975 = vmatprep.subr.mxu0 0.0
  %1976 = vmatpush1.msra.mxu0 0.0
  %1977 = vmatprep.subr.mxu0 0.0
  %1978 = vmatpush1.msra.mxu0 0.0
  %1979 = vmatprep.subr.mxu0 0.0
  %1980 = vmatpush1.msra.mxu0 0.0
  %1981 = vmatprep.subr.mxu0 0.0
  %1982 = vmatpush1.msra.mxu0 0.0
  %1983 = vmatprep.subr.mxu0 0.0
  %1984 = vmatpush1.msra.mxu0 0.0
  %1985 = vmatprep.subr.mxu0 0.0
  %1986 = vmatpush1.msra.mxu0 0.0
  %1987 = vmatprep.subr.mxu0 0.0
  %1988 = vmatpush1.msra.mxu0 0.0
  %1989 = vmatprep.subr.mxu0 0.0
  %1990 = vmatpush1.msra.mxu0 0.0
  %1991 = vmatprep.subr.mxu0 0.0
  %1992 = vmatpush1.msra.mxu0 0.0
  %1993 = vmatprep.mubr.f32.mxu0 0.0
  %1994 = vmatmul.mubr.f32.gmra.mrb[0].mxu0 %v1848
  %v1995 = vpop.f32.mrb[0].mxu0
  %v1996 = vadd.f32 0.0, %v1995
  %v1997 = vpop.f32.mrb[0].mxu0
  %v1998 = vadd.f32 0.0, %v1997
  %1999 = vmatprep.mubr.f32.mxu0 0.0
  %2000 = vmatmul.mubr.f32.gmra.mrb[0].mxu0 %v1850
  %v2001 = vpop.f32.mrb[0].mxu0
  %v2002 = vadd.f32 0.0, %v2001
  %v2003 = vpop.f32.mrb[0].mxu0
  %v2004 = vadd.f32 0.0, %v2003
  %2005 = vdwg.mxu0
  %v2006 = vmul.f32 %v1385, %v1919
  %v2007 = vmul.f32 %v1387, %v1921
  %v2008 = vmul.f32 %v1456, %v1996
  %v2009 = vmul.f32 %v1458, %v1998
  %v2010 = vadd.f32 %v2006, %v1925
  %v2011 = vadd.f32 %v2007, %v1927
  %v2012 = vadd.f32 %v2008, %v2002
  %v2013 = vadd.f32 %v2009, %v2004
  %v2014 = vxor.u32 %v2010, 2147483648
  %v2015 = vxor.u32 %v2011, 2147483648
  %v2016 = vxor.u32 %v2012, 2147483648
  %v2017 = vxor.u32 %v2013, 2147483648
  %v2018 = vmul.f32 %v2014, 1.442695
  %v2019 = vpow.pop %v2018
  %v2020 = vmul.f32 %v2015, 1.442695
  %v2021 = vpow.pop %v2020
  %v2022 = vmul.f32 %v2016, 1.442695
  %v2023 = vpow.pop %v2022
  %v2024 = vmul.f32 %v2017, 1.442695
  %v2025 = vpow.pop %v2024
  %v2026 = vadd.f32 %v2019, 1.0
  %v2027 = vadd.f32 %v2021, 1.0
  %v2028 = vadd.f32 %v2023, 1.0
  %v2029 = vadd.f32 %v2025, 1.0
  %v2030 = vrcp.pop %v2026
  %v2031 = vmul.f32 1.0, %v2030
  %v2032 = vrcp.pop %v2027
  %v2033 = vmul.f32 1.0, %v2032
  %v2034 = vrcp.pop %v2028
  %v2035 = vmul.f32 1.0, %v2034
  %v2036 = vrcp.pop %v2029
  %v2037 = vmul.f32 1.0, %v2036
  %v2038 = vmul.f32 %v2010, %v2031
  %v2039 = vmul.f32 %v2011, %v2033
  %v2040 = vmul.f32 %v2012, %v2035
  %v2041 = vmul.f32 %v2013, %v2037
  %v2042 = vadd.f32 %v2038, %v554
  %v2043 = vadd.f32 %v2039, %v555
  %v2044 = vadd.f32 %v2040, %v556
  %v2045 = vadd.f32 %v2041, %v557
  %2046 = vst [vmem:[%s9] sm:$0xff] %v2042
  %2047 = vst [vmem:[%s9 + $0x8] sm:$0xff] %v2043
  %2048 = vst [vmem:[%s9 + $0x10] sm:$0xff] %v2044
  %2049 = vst [vmem:[%s9 + $0x18] sm:$0xff] %v2045
  // Predicated region
  $region38: #{resblock_forward.1} parent=0 // pred_check
    _
  $region39: #{resblock_forward.1} parent=0 // pred_check_branch
    %2051 = sbr.rel (0) target = $region41
  $region40: #{resblock_forward.1} parent=0 // pred_region
    _
  $region41: #{resblock_forward.1} parent=0 // pred_fallthru
    _
  // Predicated region
  $region42: #{resblock_forward.1} parent=0 // pred_check
    _
  $region43: #{resblock_forward.1} parent=0 // pred_check_branch
    %2053 = sbr.rel (0) target = $region45
  $region44: #{resblock_forward.1} parent=0 // pred_region
    _
  $region45: #{resblock_forward.1} parent=0 // pred_fallthru
    _

</llo_original>
